<compile_context>
chip_gen: v7x
topology: tpu7x:2x2x1
jax: 0.10.0
libtpu: 0.0.40
codegen_flags: <defaults>
</compile_context>

<pallas_src>
import jax
import jax.numpy as jnp
from jax.experimental import pallas as pl
from jax.experimental.pallas import tpu as pltpu

INPUT_SIZE = 6
HIDDEN = 128
CLA1 = 32
CLA2 = 8
PAD_B = 8        # sublane-aligned batch padding
OUT_LANES = 128  # lane-dense output width


def gru_kernel(gi_ref, whh_ref, bhn_ref, wc_ref, bc_ref, out_ref):
    """gi_ref: (T, 8, 3H) f32 precomputed x@Wih + gib (gib folds bih + bhh[r,z]);
    whh_ref: (H, 3H) bf16; bhn_ref: (1, H) f32 = bhh[n];
    wc_ref: (H, 128) bf16 folded classifier, zero-padded lanes 8:128;
    bc_ref: (1, 128) f32 padded bias; out_ref: (8, 128) f32."""
    T, Bp, _ = gi_ref.shape
    H = whh_ref.shape[0]

    whh = whh_ref[...]                                # (H, 3H) bf16, loaded once
    bhh_n = jnp.broadcast_to(bhn_ref[...], (Bp, H))   # hoisted broadcast (Bp, H)

    h = jnp.zeros((Bp, H), jnp.float32)
    for t in range(T):                                # fully unrolled (T static)
        gi = gi_ref[t]                                # (Bp, 3H) sublane-aligned slab
        gh = jnp.dot(h.astype(whh.dtype), whh,
                     preferred_element_type=jnp.float32)      # (Bp, 3H) fp32 accum
        # PyTorch gate order in the stacked weights: [r, z, n]
        rz = jax.nn.sigmoid(gi[:, :2 * H] + gh[:, :2 * H])    # fused r|z sigmoid
        r = rz[:, :H]
        z = rz[:, H:]
        n = jnp.tanh(gi[:, 2 * H:] + r * (gh[:, 2 * H:] + bhh_n))
        h = n + z * (h - n)                           # == (1-z)*n + z*h

    # Fused classifier head (Linear(128,32) ∘ Linear(32,8) folded), lane-dense.
    y = jnp.dot(h.astype(wc_ref.dtype), wc_ref[...],
                preferred_element_type=jnp.float32) + bc_ref[...]
    out_ref[...] = y


def prepare_kernel_params(p):
    """One-time precompute of kernel-ready parameters (bias/weight folds, bf16 casts)."""
    H = HIDDEN
    # Fold bih (all gates) + the r/z parts of bhh into the input-projection bias.
    gib = p["bih"] + jnp.concatenate(
        [p["bhh"][:, :2 * H], jnp.zeros((1, H), jnp.float32)], axis=1)
    bhh_n = p["bhh"][:, 2 * H:]
    # Fold the two classifier Linears (no activation between them; Dropout identity).
    wc = p["w1_t"] @ p["w2_t"]                        # (128, 8)
    bc = p["b1"] @ p["w2_t"] + p["b2"]                # (1, 8)
    # Zero-pad classifier to 128 output lanes for a lane-dense store.
    wc_pad = jnp.zeros((H, OUT_LANES), jnp.float32).at[:, :CLA2].set(wc)
    bc_pad = jnp.zeros((1, OUT_LANES), jnp.float32).at[:, :CLA2].set(bc)
    return dict(
        wih=p["wih_t"],                               # fp32: off the recurrent path
        gib=gib,
        whh_bf16=p["whh_t"].astype(jnp.bfloat16),     # critical-path weight -> bf16
        bhh_n=bhh_n,
        wc_bf16=wc_pad.astype(jnp.bfloat16),
        bc=bc_pad,
    )


def gru_forward(x, kp):
    """x: (B, T, F) float32, batch_first like PyTorch. Returns (B, 8) float32."""
    B, T, F = x.shape
    Bp = PAD_B
    # Pad batch to a full sublane group; time-major so each timestep slab is
    # a contiguous (8, 3H) view inside the kernel.
    x_p = jnp.zeros((Bp, T, F), x.dtype).at[:B, :, :].set(x)
    x_tm = jnp.transpose(x_p, (1, 0, 2))                       # (T, Bp, F)
    # Hoisted input projection in plain XLA (K=6 is MXU-hostile and off the
    # recurrent critical path).
    gi_all = jnp.einsum("tbf,fg->tbg", x_tm, kp["wih"]) + kp["gib"]  # (T, Bp, 3H)

    vmem = pl.BlockSpec(memory_space=pltpu.MemorySpace.VMEM)
    out = pl.pallas_call(
        gru_kernel,
        out_shape=jax.ShapeDtypeStruct((Bp, OUT_LANES), jnp.float32),
        in_specs=[vmem] * 5,
        out_specs=vmem,
    )(gi_all, kp["whh_bf16"], kp["bhh_n"], kp["wc_bf16"], kp["bc"])
    return out[:B, :CLA2]


def init_params(key):
    """Deterministic synthetic parameters matching the PyTorch module's shapes."""
    ks = jax.random.split(key, 8)
    k_gru = 1.0 / jnp.sqrt(HIDDEN)
    k_l1 = 1.0 / jnp.sqrt(HIDDEN)
    k_l2 = 1.0 / jnp.sqrt(CLA1)

    def u(k, shape, scale):
        return jax.random.uniform(k, shape, jnp.float32, -scale, scale)

    # PyTorch stores weight_ih_l0 as (3H, F); we keep the transpose (F, 3H).
    wih_t = u(ks[0], (INPUT_SIZE, 3 * HIDDEN), k_gru)
    whh_t = u(ks[1], (HIDDEN, 3 * HIDDEN), k_gru)
    bih = u(ks[2], (1, 3 * HIDDEN), k_gru)
    bhh = u(ks[3], (1, 3 * HIDDEN), k_gru)
    w1_t = u(ks[4], (HIDDEN, CLA1), k_l1)       # Linear(128, 32).weight.T
    b1 = u(ks[5], (1, CLA1), k_l1)
    w2_t = u(ks[6], (CLA1, CLA2), k_l2)         # Linear(32, 8).weight.T
    b2 = u(ks[7], (1, CLA2), k_l2)
    return dict(wih_t=wih_t, whh_t=whh_t, bih=bih, bhh=bhh,
                w1_t=w1_t, b1=b1, w2_t=w2_t, b2=b2)


def reference_forward_f32(x, p):
    """Pure-fp32 JAX reference, faithful to the PyTorch module structure."""
    B, T, _ = x.shape
    h = jnp.zeros((B, HIDDEN), jnp.float32)
    for t in range(T):
        gi = x[:, t, :] @ p["wih_t"] + p["bih"]
        gh = h @ p["whh_t"] + p["bhh"]
        r = jax.nn.sigmoid(gi[:, :HIDDEN] + gh[:, :HIDDEN])
        z = jax.nn.sigmoid(gi[:, HIDDEN:2 * HIDDEN] + gh[:, HIDDEN:2 * HIDDEN])
        n = jnp.tanh(gi[:, 2 * HIDDEN:] + r * gh[:, 2 * HIDDEN:])
        h = (1.0 - z) * n + z * h
    y = h @ p["w1_t"] + p["b1"]
    y = y @ p["w2_t"] + p["b2"]
    return y


def mirrored_reference(x, kp):
    """Plain-JAX mirror of the kernel's exact math (folded biases/weights, bf16 at
    the recurrent and classifier matmuls) to validate the Pallas implementation."""
    B, T, F = x.shape
    gi_all = jnp.einsum("btf,fg->btg", x, kp["wih"]) + kp["gib"]
    whh = kp["whh_bf16"]
    h = jnp.zeros((B, HIDDEN), jnp.float32)
    for t in range(T):
        gi = gi_all[:, t, :]
        gh = jnp.dot(h.astype(jnp.bfloat16), whh, preferred_element_type=jnp.float32)
        r = jax.nn.sigmoid(gi[:, :HIDDEN] + gh[:, :HIDDEN])
        z = jax.nn.sigmoid(gi[:, HIDDEN:2 * HIDDEN] + gh[:, HIDDEN:2 * HIDDEN])
        n = jnp.tanh(gi[:, 2 * HIDDEN:] + r * (gh[:, 2 * HIDDEN:] + kp["bhh_n"]))
        h = n + z * (h - n)
    y = jnp.dot(h.astype(jnp.bfloat16), kp["wc_bf16"],
                preferred_element_type=jnp.float32) + kp["bc"]
    return y[:, :CLA2]


if __name__ == "__main__":
    key = jax.random.PRNGKey(0)
    k_x, k_p = jax.random.split(key)

    B, T = 2, 8
    x = jax.random.normal(k_x, (B, T, INPUT_SIZE), jnp.float32)
    params = init_params(k_p)
    kparams = prepare_kernel_params(params)

    y = gru_forward(x, kparams)
    y = jax.block_until_ready(y)
    assert y.shape == (B, CLA2)

    # Tight check against a plain-JAX mirror of the same (bf16-weight) math.
    y_mirror = mirrored_reference(x, kparams)
    assert jnp.allclose(y, y_mirror, atol=5e-3, rtol=5e-3), \
        "mismatch vs bf16-mirrored JAX reference"

    # Looser semantic check against the fp32 PyTorch-faithful reference
    # (slack accounts for the bf16 cast of whh / folded classifier weight).
    y_f32 = reference_forward_f32(x, params)
    assert jnp.allclose(y, y_f32, atol=5e-2, rtol=5e-2), \
        "mismatch vs fp32 PyTorch-faithful reference"

    print("KERNEL_OK")
</pallas_src>

<mosaic_0001>
module attributes {stable_mosaic.version = 11 : i64} {
  func.func @gru_kernel(%arg0: memref<8x8x384xf32, #tpu.memory_space<vmem>>, %arg1: memref<128x384xbf16, #tpu.memory_space<vmem>>, %arg2: memref<1x128xf32, #tpu.memory_space<vmem>>, %arg3: memref<128x128xbf16, #tpu.memory_space<vmem>>, %arg4: memref<1x128xf32, #tpu.memory_space<vmem>>, %arg5: memref<8x128xf32, #tpu.memory_space<vmem>>) attributes {dimension_semantics = [], scalar_prefetch = 0 : i64, scratch_operands = 0 : i64, tpu.core_type = #tpu.core_type<tc>} {
    %c0 = arith.constant 0 : index
    %c0_0 = arith.constant 0 : index
    %0 = vector.load %arg1[%c0, %c0_0] : memref<128x384xbf16, #tpu.memory_space<vmem>>, vector<128x384xbf16>
    %c0_1 = arith.constant 0 : index
    %c0_2 = arith.constant 0 : index
    %1 = vector.load %arg2[%c0_1, %c0_2] : memref<1x128xf32, #tpu.memory_space<vmem>>, vector<1x128xf32>
    %2 = vector.shape_cast %1 : vector<1x128xf32> to vector<1x128xf32>
    %3 = vector.broadcast %2 : vector<1x128xf32> to vector<8x128xf32>
    %cst = arith.constant 0.000000e+00 : f32
    %4 = vector.broadcast %cst : f32 to vector<8x128xf32>
    %c0_3 = arith.constant 0 : index
    %c0_4 = arith.constant 0 : index
    %c0_5 = arith.constant 0 : index
    %5 = vector.load %arg0[%c0_3, %c0_4, %c0_5] : memref<8x8x384xf32, #tpu.memory_space<vmem>>, vector<1x8x384xf32>
    %6 = vector.shape_cast %5 : vector<1x8x384xf32> to vector<8x384xf32>
    %7 = arith.truncf %4 : vector<8x128xf32> to vector<8x128xbf16>
    %cst_6 = arith.constant dense<0.000000e+00> : vector<8x384xf32>
    %8 = tpu.matmul %7, %0, %cst_6 {dimension_numbers = #tpu.dot_dimension_numbers<[1], [0], [0], [1], [0, 0, 1, 1], [], []>} : vector<8x128xbf16>, vector<128x384xbf16>, vector<8x384xf32> -> vector<8x384xf32>
    %9 = vector.extract_strided_slice %6 {offsets = [0, 0], sizes = [8, 256], strides = [1, 1]} : vector<8x384xf32> to vector<8x256xf32>
    %10 = vector.extract_strided_slice %8 {offsets = [0, 0], sizes = [8, 256], strides = [1, 1]} : vector<8x384xf32> to vector<8x256xf32>
    %11 = arith.addf %9, %10 : vector<8x256xf32>
    %12 = arith.negf %11 : vector<8x256xf32>
    %13 = math.exp %12 : vector<8x256xf32>
    %cst_7 = arith.constant 1.000000e+00 : f32
    %14 = vector.broadcast %cst_7 : f32 to vector<8x256xf32>
    %15 = arith.addf %14, %13 : vector<8x256xf32>
    %16 = arith.divf %14, %15 : vector<8x256xf32>
    %17 = vector.extract_strided_slice %16 {offsets = [0, 0], sizes = [8, 128], strides = [1, 1]} : vector<8x256xf32> to vector<8x128xf32>
    %18 = vector.extract_strided_slice %16 {offsets = [0, 128], sizes = [8, 128], strides = [1, 1]} : vector<8x256xf32> to vector<8x128xf32>
    %19 = vector.extract_strided_slice %6 {offsets = [0, 256], sizes = [8, 128], strides = [1, 1]} : vector<8x384xf32> to vector<8x128xf32>
    %20 = vector.extract_strided_slice %8 {offsets = [0, 256], sizes = [8, 128], strides = [1, 1]} : vector<8x384xf32> to vector<8x128xf32>
    %21 = arith.addf %20, %3 : vector<8x128xf32>
    %22 = arith.mulf %17, %21 : vector<8x128xf32>
    %23 = arith.addf %19, %22 : vector<8x128xf32>
    %24 = math.tanh %23 : vector<8x128xf32>
    %25 = arith.subf %4, %24 : vector<8x128xf32>
    %26 = arith.mulf %18, %25 : vector<8x128xf32>
    %27 = arith.addf %24, %26 : vector<8x128xf32>
    %c1 = arith.constant 1 : index
    %c0_8 = arith.constant 0 : index
    %c0_9 = arith.constant 0 : index
    %28 = vector.load %arg0[%c1, %c0_8, %c0_9] : memref<8x8x384xf32, #tpu.memory_space<vmem>>, vector<1x8x384xf32>
    %29 = vector.shape_cast %28 : vector<1x8x384xf32> to vector<8x384xf32>
    %30 = arith.truncf %27 : vector<8x128xf32> to vector<8x128xbf16>
    %cst_10 = arith.constant dense<0.000000e+00> : vector<8x384xf32>
    %31 = tpu.matmul %30, %0, %cst_10 {dimension_numbers = #tpu.dot_dimension_numbers<[1], [0], [0], [1], [0, 0, 1, 1], [], []>} : vector<8x128xbf16>, vector<128x384xbf16>, vector<8x384xf32> -> vector<8x384xf32>
    %32 = vector.extract_strided_slice %29 {offsets = [0, 0], sizes = [8, 256], strides = [1, 1]} : vector<8x384xf32> to vector<8x256xf32>
    %33 = vector.extract_strided_slice %31 {offsets = [0, 0], sizes = [8, 256], strides = [1, 1]} : vector<8x384xf32> to vector<8x256xf32>
    %34 = arith.addf %32, %33 : vector<8x256xf32>
    %35 = arith.negf %34 : vector<8x256xf32>
    %36 = math.exp %35 : vector<8x256xf32>
    %cst_11 = arith.constant 1.000000e+00 : f32
    %37 = vector.broadcast %cst_11 : f32 to vector<8x256xf32>
    %38 = arith.addf %37, %36 : vector<8x256xf32>
    %39 = arith.divf %37, %38 : vector<8x256xf32>
    %40 = vector.extract_strided_slice %39 {offsets = [0, 0], sizes = [8, 128], strides = [1, 1]} : vector<8x256xf32> to vector<8x128xf32>
    %41 = vector.extract_strided_slice %39 {offsets = [0, 128], sizes = [8, 128], strides = [1, 1]} : vector<8x256xf32> to vector<8x128xf32>
    %42 = vector.extract_strided_slice %29 {offsets = [0, 256], sizes = [8, 128], strides = [1, 1]} : vector<8x384xf32> to vector<8x128xf32>
    %43 = vector.extract_strided_slice %31 {offsets = [0, 256], sizes = [8, 128], strides = [1, 1]} : vector<8x384xf32> to vector<8x128xf32>
    %44 = arith.addf %43, %3 : vector<8x128xf32>
    %45 = arith.mulf %40, %44 : vector<8x128xf32>
    %46 = arith.addf %42, %45 : vector<8x128xf32>
    %47 = math.tanh %46 : vector<8x128xf32>
    %48 = arith.subf %27, %47 : vector<8x128xf32>
    %49 = arith.mulf %41, %48 : vector<8x128xf32>
    %50 = arith.addf %47, %49 : vector<8x128xf32>
    %c2 = arith.constant 2 : index
    %c0_12 = arith.constant 0 : index
    %c0_13 = arith.constant 0 : index
    %51 = vector.load %arg0[%c2, %c0_12, %c0_13] : memref<8x8x384xf32, #tpu.memory_space<vmem>>, vector<1x8x384xf32>
    %52 = vector.shape_cast %51 : vector<1x8x384xf32> to vector<8x384xf32>
    %53 = arith.truncf %50 : vector<8x128xf32> to vector<8x128xbf16>
    %cst_14 = arith.constant dense<0.000000e+00> : vector<8x384xf32>
    %54 = tpu.matmul %53, %0, %cst_14 {dimension_numbers = #tpu.dot_dimension_numbers<[1], [0], [0], [1], [0, 0, 1, 1], [], []>} : vector<8x128xbf16>, vector<128x384xbf16>, vector<8x384xf32> -> vector<8x384xf32>
    %55 = vector.extract_strided_slice %52 {offsets = [0, 0], sizes = [8, 256], strides = [1, 1]} : vector<8x384xf32> to vector<8x256xf32>
    %56 = vector.extract_strided_slice %54 {offsets = [0, 0], sizes = [8, 256], strides = [1, 1]} : vector<8x384xf32> to vector<8x256xf32>
    %57 = arith.addf %55, %56 : vector<8x256xf32>
    %58 = arith.negf %57 : vector<8x256xf32>
    %59 = math.exp %58 : vector<8x256xf32>
    %cst_15 = arith.constant 1.000000e+00 : f32
    %60 = vector.broadcast %cst_15 : f32 to vector<8x256xf32>
    %61 = arith.addf %60, %59 : vector<8x256xf32>
    %62 = arith.divf %60, %61 : vector<8x256xf32>
    %63 = vector.extract_strided_slice %62 {offsets = [0, 0], sizes = [8, 128], strides = [1, 1]} : vector<8x256xf32> to vector<8x128xf32>
    %64 = vector.extract_strided_slice %62 {offsets = [0, 128], sizes = [8, 128], strides = [1, 1]} : vector<8x256xf32> to vector<8x128xf32>
    %65 = vector.extract_strided_slice %52 {offsets = [0, 256], sizes = [8, 128], strides = [1, 1]} : vector<8x384xf32> to vector<8x128xf32>
    %66 = vector.extract_strided_slice %54 {offsets = [0, 256], sizes = [8, 128], strides = [1, 1]} : vector<8x384xf32> to vector<8x128xf32>
    %67 = arith.addf %66, %3 : vector<8x128xf32>
    %68 = arith.mulf %63, %67 : vector<8x128xf32>
    %69 = arith.addf %65, %68 : vector<8x128xf32>
    %70 = math.tanh %69 : vector<8x128xf32>
    %71 = arith.subf %50, %70 : vector<8x128xf32>
    %72 = arith.mulf %64, %71 : vector<8x128xf32>
    %73 = arith.addf %70, %72 : vector<8x128xf32>
    %c3 = arith.constant 3 : index
    %c0_16 = arith.constant 0 : index
    %c0_17 = arith.constant 0 : index
    %74 = vector.load %arg0[%c3, %c0_16, %c0_17] : memref<8x8x384xf32, #tpu.memory_space<vmem>>, vector<1x8x384xf32>
    %75 = vector.shape_cast %74 : vector<1x8x384xf32> to vector<8x384xf32>
    %76 = arith.truncf %73 : vector<8x128xf32> to vector<8x128xbf16>
    %cst_18 = arith.constant dense<0.000000e+00> : vector<8x384xf32>
    %77 = tpu.matmul %76, %0, %cst_18 {dimension_numbers = #tpu.dot_dimension_numbers<[1], [0], [0], [1], [0, 0, 1, 1], [], []>} : vector<8x128xbf16>, vector<128x384xbf16>, vector<8x384xf32> -> vector<8x384xf32>
    %78 = vector.extract_strided_slice %75 {offsets = [0, 0], sizes = [8, 256], strides = [1, 1]} : vector<8x384xf32> to vector<8x256xf32>
    %79 = vector.extract_strided_slice %77 {offsets = [0, 0], sizes = [8, 256], strides = [1, 1]} : vector<8x384xf32> to vector<8x256xf32>
    %80 = arith.addf %78, %79 : vector<8x256xf32>
    %81 = arith.negf %80 : vector<8x256xf32>
    %82 = math.exp %81 : vector<8x256xf32>
    %cst_19 = arith.constant 1.000000e+00 : f32
    %83 = vector.broadcast %cst_19 : f32 to vector<8x256xf32>
    %84 = arith.addf %83, %82 : vector<8x256xf32>
    %85 = arith.divf %83, %84 : vector<8x256xf32>
    %86 = vector.extract_strided_slice %85 {offsets = [0, 0], sizes = [8, 128], strides = [1, 1]} : vector<8x256xf32> to vector<8x128xf32>
    %87 = vector.extract_strided_slice %85 {offsets = [0, 128], sizes = [8, 128], strides = [1, 1]} : vector<8x256xf32> to vector<8x128xf32>
    %88 = vector.extract_strided_slice %75 {offsets = [0, 256], sizes = [8, 128], strides = [1, 1]} : vector<8x384xf32> to vector<8x128xf32>
    %89 = vector.extract_strided_slice %77 {offsets = [0, 256], sizes = [8, 128], strides = [1, 1]} : vector<8x384xf32> to vector<8x128xf32>
    %90 = arith.addf %89, %3 : vector<8x128xf32>
    %91 = arith.mulf %86, %90 : vector<8x128xf32>
    %92 = arith.addf %88, %91 : vector<8x128xf32>
    %93 = math.tanh %92 : vector<8x128xf32>
    %94 = arith.subf %73, %93 : vector<8x128xf32>
    %95 = arith.mulf %87, %94 : vector<8x128xf32>
    %96 = arith.addf %93, %95 : vector<8x128xf32>
    %c4 = arith.constant 4 : index
    %c0_20 = arith.constant 0 : index
    %c0_21 = arith.constant 0 : index
    %97 = vector.load %arg0[%c4, %c0_20, %c0_21] : memref<8x8x384xf32, #tpu.memory_space<vmem>>, vector<1x8x384xf32>
    %98 = vector.shape_cast %97 : vector<1x8x384xf32> to vector<8x384xf32>
    %99 = arith.truncf %96 : vector<8x128xf32> to vector<8x128xbf16>
    %cst_22 = arith.constant dense<0.000000e+00> : vector<8x384xf32>
    %100 = tpu.matmul %99, %0, %cst_22 {dimension_numbers = #tpu.dot_dimension_numbers<[1], [0], [0], [1], [0, 0, 1, 1], [], []>} : vector<8x128xbf16>, vector<128x384xbf16>, vector<8x384xf32> -> vector<8x384xf32>
    %101 = vector.extract_strided_slice %98 {offsets = [0, 0], sizes = [8, 256], strides = [1, 1]} : vector<8x384xf32> to vector<8x256xf32>
    %102 = vector.extract_strided_slice %100 {offsets = [0, 0], sizes = [8, 256], strides = [1, 1]} : vector<8x384xf32> to vector<8x256xf32>
    %103 = arith.addf %101, %102 : vector<8x256xf32>
    %104 = arith.negf %103 : vector<8x256xf32>
    %105 = math.exp %104 : vector<8x256xf32>
    %cst_23 = arith.constant 1.000000e+00 : f32
    %106 = vector.broadcast %cst_23 : f32 to vector<8x256xf32>
    %107 = arith.addf %106, %105 : vector<8x256xf32>
    %108 = arith.divf %106, %107 : vector<8x256xf32>
    %109 = vector.extract_strided_slice %108 {offsets = [0, 0], sizes = [8, 128], strides = [1, 1]} : vector<8x256xf32> to vector<8x128xf32>
    %110 = vector.extract_strided_slice %108 {offsets = [0, 128], sizes = [8, 128], strides = [1, 1]} : vector<8x256xf32> to vector<8x128xf32>
    %111 = vector.extract_strided_slice %98 {offsets = [0, 256], sizes = [8, 128], strides = [1, 1]} : vector<8x384xf32> to vector<8x128xf32>
    %112 = vector.extract_strided_slice %100 {offsets = [0, 256], sizes = [8, 128], strides = [1, 1]} : vector<8x384xf32> to vector<8x128xf32>
    %113 = arith.addf %112, %3 : vector<8x128xf32>
    %114 = arith.mulf %109, %113 : vector<8x128xf32>
    %115 = arith.addf %111, %114 : vector<8x128xf32>
    %116 = math.tanh %115 : vector<8x128xf32>
    %117 = arith.subf %96, %116 : vector<8x128xf32>
    %118 = arith.mulf %110, %117 : vector<8x128xf32>
    %119 = arith.addf %116, %118 : vector<8x128xf32>
    %c5 = arith.constant 5 : index
    %c0_24 = arith.constant 0 : index
    %c0_25 = arith.constant 0 : index
    %120 = vector.load %arg0[%c5, %c0_24, %c0_25] : memref<8x8x384xf32, #tpu.memory_space<vmem>>, vector<1x8x384xf32>
    %121 = vector.shape_cast %120 : vector<1x8x384xf32> to vector<8x384xf32>
    %122 = arith.truncf %119 : vector<8x128xf32> to vector<8x128xbf16>
    %cst_26 = arith.constant dense<0.000000e+00> : vector<8x384xf32>
    %123 = tpu.matmul %122, %0, %cst_26 {dimension_numbers = #tpu.dot_dimension_numbers<[1], [0], [0], [1], [0, 0, 1, 1], [], []>} : vector<8x128xbf16>, vector<128x384xbf16>, vector<8x384xf32> -> vector<8x384xf32>
    %124 = vector.extract_strided_slice %121 {offsets = [0, 0], sizes = [8, 256], strides = [1, 1]} : vector<8x384xf32> to vector<8x256xf32>
    %125 = vector.extract_strided_slice %123 {offsets = [0, 0], sizes = [8, 256], strides = [1, 1]} : vector<8x384xf32> to vector<8x256xf32>
    %126 = arith.addf %124, %125 : vector<8x256xf32>
    %127 = arith.negf %126 : vector<8x256xf32>
    %128 = math.exp %127 : vector<8x256xf32>
    %cst_27 = arith.constant 1.000000e+00 : f32
    %129 = vector.broadcast %cst_27 : f32 to vector<8x256xf32>
    %130 = arith.addf %129, %128 : vector<8x256xf32>
    %131 = arith.divf %129, %130 : vector<8x256xf32>
    %132 = vector.extract_strided_slice %131 {offsets = [0, 0], sizes = [8, 128], strides = [1, 1]} : vector<8x256xf32> to vector<8x128xf32>
    %133 = vector.extract_strided_slice %131 {offsets = [0, 128], sizes = [8, 128], strides = [1, 1]} : vector<8x256xf32> to vector<8x128xf32>
    %134 = vector.extract_strided_slice %121 {offsets = [0, 256], sizes = [8, 128], strides = [1, 1]} : vector<8x384xf32> to vector<8x128xf32>
    %135 = vector.extract_strided_slice %123 {offsets = [0, 256], sizes = [8, 128], strides = [1, 1]} : vector<8x384xf32> to vector<8x128xf32>
    %136 = arith.addf %135, %3 : vector<8x128xf32>
    %137 = arith.mulf %132, %136 : vector<8x128xf32>
    %138 = arith.addf %134, %137 : vector<8x128xf32>
    %139 = math.tanh %138 : vector<8x128xf32>
    %140 = arith.subf %119, %139 : vector<8x128xf32>
    %141 = arith.mulf %133, %140 : vector<8x128xf32>
    %142 = arith.addf %139, %141 : vector<8x128xf32>
    %c6 = arith.constant 6 : index
    %c0_28 = arith.constant 0 : index
    %c0_29 = arith.constant 0 : index
    %143 = vector.load %arg0[%c6, %c0_28, %c0_29] : memref<8x8x384xf32, #tpu.memory_space<vmem>>, vector<1x8x384xf32>
    %144 = vector.shape_cast %143 : vector<1x8x384xf32> to vector<8x384xf32>
    %145 = arith.truncf %142 : vector<8x128xf32> to vector<8x128xbf16>
    %cst_30 = arith.constant dense<0.000000e+00> : vector<8x384xf32>
    %146 = tpu.matmul %145, %0, %cst_30 {dimension_numbers = #tpu.dot_dimension_numbers<[1], [0], [0], [1], [0, 0, 1, 1], [], []>} : vector<8x128xbf16>, vector<128x384xbf16>, vector<8x384xf32> -> vector<8x384xf32>
    %147 = vector.extract_strided_slice %144 {offsets = [0, 0], sizes = [8, 256], strides = [1, 1]} : vector<8x384xf32> to vector<8x256xf32>
    %148 = vector.extract_strided_slice %146 {offsets = [0, 0], sizes = [8, 256], strides = [1, 1]} : vector<8x384xf32> to vector<8x256xf32>
    %149 = arith.addf %147, %148 : vector<8x256xf32>
    %150 = arith.negf %149 : vector<8x256xf32>
    %151 = math.exp %150 : vector<8x256xf32>
    %cst_31 = arith.constant 1.000000e+00 : f32
    %152 = vector.broadcast %cst_31 : f32 to vector<8x256xf32>
    %153 = arith.addf %152, %151 : vector<8x256xf32>
    %154 = arith.divf %152, %153 : vector<8x256xf32>
    %155 = vector.extract_strided_slice %154 {offsets = [0, 0], sizes = [8, 128], strides = [1, 1]} : vector<8x256xf32> to vector<8x128xf32>
    %156 = vector.extract_strided_slice %154 {offsets = [0, 128], sizes = [8, 128], strides = [1, 1]} : vector<8x256xf32> to vector<8x128xf32>
    %157 = vector.extract_strided_slice %144 {offsets = [0, 256], sizes = [8, 128], strides = [1, 1]} : vector<8x384xf32> to vector<8x128xf32>
    %158 = vector.extract_strided_slice %146 {offsets = [0, 256], sizes = [8, 128], strides = [1, 1]} : vector<8x384xf32> to vector<8x128xf32>
    %159 = arith.addf %158, %3 : vector<8x128xf32>
    %160 = arith.mulf %155, %159 : vector<8x128xf32>
    %161 = arith.addf %157, %160 : vector<8x128xf32>
    %162 = math.tanh %161 : vector<8x128xf32>
    %163 = arith.subf %142, %162 : vector<8x128xf32>
    %164 = arith.mulf %156, %163 : vector<8x128xf32>
    %165 = arith.addf %162, %164 : vector<8x128xf32>
    %c7 = arith.constant 7 : index
    %c0_32 = arith.constant 0 : index
    %c0_33 = arith.constant 0 : index
    %166 = vector.load %arg0[%c7, %c0_32, %c0_33] : memref<8x8x384xf32, #tpu.memory_space<vmem>>, vector<1x8x384xf32>
    %167 = vector.shape_cast %166 : vector<1x8x384xf32> to vector<8x384xf32>
    %168 = arith.truncf %165 : vector<8x128xf32> to vector<8x128xbf16>
    %cst_34 = arith.constant dense<0.000000e+00> : vector<8x384xf32>
    %169 = tpu.matmul %168, %0, %cst_34 {dimension_numbers = #tpu.dot_dimension_numbers<[1], [0], [0], [1], [0, 0, 1, 1], [], []>} : vector<8x128xbf16>, vector<128x384xbf16>, vector<8x384xf32> -> vector<8x384xf32>
    %170 = vector.extract_strided_slice %167 {offsets = [0, 0], sizes = [8, 256], strides = [1, 1]} : vector<8x384xf32> to vector<8x256xf32>
    %171 = vector.extract_strided_slice %169 {offsets = [0, 0], sizes = [8, 256], strides = [1, 1]} : vector<8x384xf32> to vector<8x256xf32>
    %172 = arith.addf %170, %171 : vector<8x256xf32>
    %173 = arith.negf %172 : vector<8x256xf32>
    %174 = math.exp %173 : vector<8x256xf32>
    %cst_35 = arith.constant 1.000000e+00 : f32
    %175 = vector.broadcast %cst_35 : f32 to vector<8x256xf32>
    %176 = arith.addf %175, %174 : vector<8x256xf32>
    %177 = arith.divf %175, %176 : vector<8x256xf32>
    %178 = vector.extract_strided_slice %177 {offsets = [0, 0], sizes = [8, 128], strides = [1, 1]} : vector<8x256xf32> to vector<8x128xf32>
    %179 = vector.extract_strided_slice %177 {offsets = [0, 128], sizes = [8, 128], strides = [1, 1]} : vector<8x256xf32> to vector<8x128xf32>
    %180 = vector.extract_strided_slice %167 {offsets = [0, 256], sizes = [8, 128], strides = [1, 1]} : vector<8x384xf32> to vector<8x128xf32>
    %181 = vector.extract_strided_slice %169 {offsets = [0, 256], sizes = [8, 128], strides = [1, 1]} : vector<8x384xf32> to vector<8x128xf32>
    %182 = arith.addf %181, %3 : vector<8x128xf32>
    %183 = arith.mulf %178, %182 : vector<8x128xf32>
    %184 = arith.addf %180, %183 : vector<8x128xf32>
    %185 = math.tanh %184 : vector<8x128xf32>
    %186 = arith.subf %165, %185 : vector<8x128xf32>
    %187 = arith.mulf %179, %186 : vector<8x128xf32>
    %188 = arith.addf %185, %187 : vector<8x128xf32>
    %189 = arith.truncf %188 : vector<8x128xf32> to vector<8x128xbf16>
    %c0_36 = arith.constant 0 : index
    %c0_37 = arith.constant 0 : index
    %190 = vector.load %arg3[%c0_36, %c0_37] : memref<128x128xbf16, #tpu.memory_space<vmem>>, vector<128x128xbf16>
    %cst_38 = arith.constant dense<0.000000e+00> : vector<8x128xf32>
    %191 = tpu.matmul %189, %190, %cst_38 {dimension_numbers = #tpu.dot_dimension_numbers<[1], [0], [0], [1], [0, 0, 1, 1], [], []>} : vector<8x128xbf16>, vector<128x128xbf16>, vector<8x128xf32> -> vector<8x128xf32>
    %c0_39 = arith.constant 0 : index
    %c0_40 = arith.constant 0 : index
    %192 = vector.load %arg4[%c0_39, %c0_40] : memref<1x128xf32, #tpu.memory_space<vmem>>, vector<1x128xf32>
    %193 = vector.broadcast %192 : vector<1x128xf32> to vector<8x128xf32>
    %194 = arith.addf %191, %193 : vector<8x128xf32>
    %c0_41 = arith.constant 0 : index
    %c0_42 = arith.constant 0 : index
    %195 = vector.load %arg5[%c0_41, %c0_42] : memref<8x128xf32, #tpu.memory_space<vmem>>, vector<8x128xf32>
    tpu.vector_store %arg5[%c0_41, %c0_42], %194 {strides = array<i32>} : memref<8x128xf32, #tpu.memory_space<vmem>>, vector<8x128xf32>,
    return
  }
}

</mosaic_0001>

<llo_original>
// kernel: tpu_custom_call.1
$region0: #{tpu_custom_call.1}
  #allocation0 [shape = 'u32[]', space=smem, size = 0x4, offset = 0x4, fixed_abs, tag = 'smem constant byte address 0x4 - core index']
  #allocation1 [shape = 'u32[144,128]{1,0:T(1,128)}', space=vmem, size = 0x12000, scoped, tag = 'internal scratch']
  %s0 = inlined_call_operand.hbm [shape: f32[8,8,384], index: 0, kind: input, shape index: {}]
  %s1 = inlined_call_operand.hbm [shape: bf16[128,384], index: 1, kind: input, shape index: {}]
  %s2 = inlined_call_operand.vmem [shape: f32[1,128], index: 2, kind: input, shape index: {}]
  %s3 = inlined_call_operand.hbm [shape: bf16[128,128], index: 3, kind: input, shape index: {}]
  %s4 = inlined_call_operand.vmem [shape: f32[1,128], index: 4, kind: input, shape index: {}]
  %s5 = inlined_call_operand.hbm [shape: f32[8,128], index: 5, kind: output, shape index: {}]
  %s6 = sld [smem:[#allocation0]]
  $region42: #{tpu_custom_call.1} parent=0
    _
  %s8 = ssub.s32 1, %s6
  %s9 = scalar_select 0, %s8, %s6
  $region1: #{tpu_custom_call.1} parent=0
    #allocation2 [shape = 'u8[98304]{0}', space=vmem, size = 0x18000, scoped, tag = 'input window, operand 0, single buffered']
    #allocation3 [shape = 's32[1]{0}', space=sflag, size = 0x4, scoped, tag = 'scoped memory for tpu_custom_call.1']
    #allocation4 [shape = 's32[1]{0}', space=sflag, size = 0x4, scoped, tag = 'scoped memory for tpu_custom_call.1']
    #allocation5 [shape = 'u8[98304]{0}', space=vmem, size = 0x18000, scoped, tag = 'input window, operand 1, single buffered']
    #allocation6 [shape = 's32[1]{0}', space=sflag, size = 0x4, scoped, tag = 'scoped memory for tpu_custom_call.1']
    #allocation7 [shape = 'u8[32768]{0}', space=vmem, size = 0x8000, scoped, tag = 'input window, operand 3, single buffered']
    #allocation8 [shape = 'u8[4096]{0}', space=vmem, size = 0x1000, scoped, tag = 'output window, operand 0, single buffered']
    %10 = vsyncpa [#allocation3], 0
    %11 = vsyncpa [#allocation6], 0
    %12 = vsyncpa [#allocation4], 0
    // Predicated region
    $region2: #{tpu_custom_call.1} parent=1 // pred_check
      _
    $region3: #{tpu_custom_call.1} parent=1 // pred_check_branch
      %14 = sbr.rel (0) target = $region5
    $region4: #{tpu_custom_call.1} parent=1 // pred_region
      %s16 = ssub.s32 3072, 3072
      %17 = vsyncadd [#allocation3], %s16
      %s18 = sshll.u32 [#allocation2], 4
      %s19 = int_to_ptr.vmem [resolvable:$true] %s18
      %24 = dma.hbm_to_vmem [thread:$0]  %s0, 3072, %s19, [#allocation3], 384, 384, 24
    $region5: #{tpu_custom_call.1} parent=1 // pred_fallthru
      _
    // Predicated region
    $region6: #{tpu_custom_call.1} parent=1 // pred_check
      _
    $region7: #{tpu_custom_call.1} parent=1 // pred_check_branch
      %26 = sbr.rel (0) target = $region9
    $region8: #{tpu_custom_call.1} parent=1 // pred_region
      %s28 = ssub.s32 3072, 3072
      %29 = vsyncadd [#allocation6], %s28
      %s30 = sshll.u32 [#allocation5], 4
      %s31 = int_to_ptr.vmem [resolvable:$true] %s30
      %36 = dma.hbm_to_vmem [thread:$0]  %s1, 3072, %s31, [#allocation6], 192, 192, 12
    $region9: #{tpu_custom_call.1} parent=1 // pred_fallthru
      _
    // Predicated region
    $region10: #{tpu_custom_call.1} parent=1 // pred_check
      _
    $region11: #{tpu_custom_call.1} parent=1 // pred_check_branch
      %38 = sbr.rel (0) target = $region13
    $region12: #{tpu_custom_call.1} parent=1 // pred_region
      _
    $region13: #{tpu_custom_call.1} parent=1 // pred_fallthru
      _
    // Predicated region
    $region14: #{tpu_custom_call.1} parent=1 // pred_check
      _
    $region15: #{tpu_custom_call.1} parent=1 // pred_check_branch
      %40 = sbr.rel (0) target = $region17
    $region16: #{tpu_custom_call.1} parent=1 // pred_region
      %s42 = ssub.s32 1024, 1024
      %43 = vsyncadd [#allocation6], %s42
      %s44 = sshll.u32 [#allocation7], 4
      %s45 = int_to_ptr.vmem [resolvable:$true] %s44
      %50 = dma.hbm_to_vmem [thread:$0]  %s3, 1024, %s45, [#allocation6], 64, 64, 4
    $region17: #{tpu_custom_call.1} parent=1 // pred_fallthru
      _
    // Predicated region
    $region18: #{tpu_custom_call.1} parent=1 // pred_check
      _
    $region19: #{tpu_custom_call.1} parent=1 // pred_check_branch
      %52 = sbr.rel (0) target = $region21
    $region20: #{tpu_custom_call.1} parent=1 // pred_region
      _
    $region21: #{tpu_custom_call.1} parent=1 // pred_fallthru
      _
    // Predicated region
    $region22: #{tpu_custom_call.1} parent=1 // pred_check
      _
    $region23: #{tpu_custom_call.1} parent=1 // pred_check_branch
      %54 = sbr.rel (0) target = $region25
    $region24: #{tpu_custom_call.1} parent=1 // pred_region
      %55 = dma.done [#allocation3], 3072
    $region25: #{tpu_custom_call.1} parent=1 // pred_fallthru
      _
    // Predicated region
    $region26: #{tpu_custom_call.1} parent=1 // pred_check
      _
    $region27: #{tpu_custom_call.1} parent=1 // pred_check_branch
      %57 = sbr.rel (0) target = $region29
    $region28: #{tpu_custom_call.1} parent=1 // pred_region
      %58 = dma.done [#allocation6], 3072
    $region29: #{tpu_custom_call.1} parent=1 // pred_fallthru
      _
    // Predicated region
    $region30: #{tpu_custom_call.1} parent=1 // pred_check
      _
    $region31: #{tpu_custom_call.1} parent=1 // pred_check_branch
      %60 = sbr.rel (0) target = $region33
    $region32: #{tpu_custom_call.1} parent=1 // pred_region
      %61 = dma.done [#allocation6], 1024
    $region33: #{tpu_custom_call.1} parent=1 // pred_fallthru
      _
    %v63 = vld [vmem:[#allocation5] sm:$0xff]
    %v64 = vld [vmem:[#allocation5 + $0x8] sm:$0xf]
    %v65 = vld [vmem:[#allocation5 + $0xc] sm:$0xff]
    %v66 = vld [vmem:[#allocation5 + $0x14] sm:$0xf]
    %v67 = vld [vmem:[#allocation5 + $0x18] sm:$0xff]
    %v68 = vld [vmem:[#allocation5 + $0x20] sm:$0xf]
    %v69 = vld [vmem:[#allocation5 + $0x24] sm:$0xff]
    %v70 = vld [vmem:[#allocation5 + $0x2c] sm:$0xf]
    %v71 = vld [vmem:[#allocation5 + $0x30] sm:$0xff]
    %v72 = vld [vmem:[#allocation5 + $0x38] sm:$0xf]
    %v73 = vld [vmem:[#allocation5 + $0x3c] sm:$0xff]
    %v74 = vld [vmem:[#allocation5 + $0x44] sm:$0xf]
    %v75 = vld [vmem:[#allocation5 + $0x48] sm:$0xff]
    %v76 = vld [vmem:[#allocation5 + $0x50] sm:$0xf]
    %v77 = vld [vmem:[#allocation5 + $0x54] sm:$0xff]
    %v78 = vld [vmem:[#allocation5 + $0x5c] sm:$0xf]
    %v79 = vld [vmem:[#allocation5 + $0x60] sm:$0xff]
    %v80 = vld [vmem:[#allocation5 + $0x68] sm:$0xf]
    %v81 = vld [vmem:[#allocation5 + $0x6c] sm:$0xff]
    %v82 = vld [vmem:[#allocation5 + $0x74] sm:$0xf]
    %v83 = vld [vmem:[#allocation5 + $0x78] sm:$0xff]
    %v84 = vld [vmem:[#allocation5 + $0x80] sm:$0xf]
    %v85 = vld [vmem:[#allocation5 + $0x84] sm:$0xff]
    %v86 = vld [vmem:[#allocation5 + $0x8c] sm:$0xf]
    %v87 = vld [vmem:[#allocation5 + $0x90] sm:$0xff]
    %v88 = vld [vmem:[#allocation5 + $0x98] sm:$0xf]
    %v89 = vld [vmem:[#allocation5 + $0x9c] sm:$0xff]
    %v90 = vld [vmem:[#allocation5 + $0xa4] sm:$0xf]
    %v91 = vld [vmem:[#allocation5 + $0xa8] sm:$0xff]
    %v92 = vld [vmem:[#allocation5 + $0xb0] sm:$0xf]
    %v93 = vld [vmem:[#allocation5 + $0xb4] sm:$0xff]
    %v94 = vld [vmem:[#allocation5 + $0xbc] sm:$0xf]
    %v95 = vld [vmem:[%s2] sm:$0x1]
    %v97 = vlaneseq
    %v98 = vshrl.u32 %v97, 7
    %v99 = vsub.s32 0, %v98
    %v100 = vrot.slane %v95, %v99
    %v102 = vld [vmem:[#allocation2] sm:$0xff]
    %v103 = vld [vmem:[#allocation2 + $0x8] sm:$0xff]
    %v104 = vld [vmem:[#allocation2 + $0x10] sm:$0xff]
    %v137 = vunpack.c.l.b16 %v63
    %v138 = vunpack.c.h.b16 %v63
    %v139 = vunpack.c.l.b16 %v64
    %v140 = vunpack.c.l.b16 %v65
    %v141 = vunpack.c.h.b16 %v65
    %v142 = vunpack.c.l.b16 %v66
    %v143 = vunpack.c.l.b16 %v67
    %v144 = vunpack.c.h.b16 %v67
    %v145 = vunpack.c.l.b16 %v68
    %v146 = vunpack.c.l.b16 %v69
    %v147 = vunpack.c.h.b16 %v69
    %v148 = vunpack.c.l.b16 %v70
    %v149 = vunpack.c.l.b16 %v71
    %v150 = vunpack.c.h.b16 %v71
    %v151 = vunpack.c.l.b16 %v72
    %v152 = vunpack.c.l.b16 %v73
    %v153 = vunpack.c.h.b16 %v73
    %v154 = vunpack.c.l.b16 %v74
    %v155 = vunpack.c.l.b16 %v75
    %v156 = vunpack.c.h.b16 %v75
    %v157 = vunpack.c.l.b16 %v76
    %v158 = vunpack.c.l.b16 %v77
    %v159 = vunpack.c.h.b16 %v77
    %v160 = vunpack.c.l.b16 %v78
    %v161 = vunpack.c.l.b16 %v79
    %v162 = vunpack.c.h.b16 %v79
    %v163 = vunpack.c.l.b16 %v80
    %v164 = vunpack.c.l.b16 %v81
    %v165 = vunpack.c.h.b16 %v81
    %v166 = vunpack.c.l.b16 %v82
    %v167 = vunpack.c.l.b16 %v83
    %v168 = vunpack.c.h.b16 %v83
    %v169 = vunpack.c.l.b16 %v84
    %v170 = vunpack.c.l.b16 %v85
    %v171 = vunpack.c.h.b16 %v85
    %v172 = vunpack.c.l.b16 %v86
    %v173 = vunpack.c.l.b16 %v87
    %v174 = vunpack.c.h.b16 %v87
    %v175 = vunpack.c.l.b16 %v88
    %v176 = vunpack.c.l.b16 %v89
    %v177 = vunpack.c.h.b16 %v89
    %v178 = vunpack.c.l.b16 %v90
    %v179 = vunpack.c.l.b16 %v91
    %v180 = vunpack.c.h.b16 %v91
    %v181 = vunpack.c.l.b16 %v92
    %v182 = vunpack.c.l.b16 %v93
    %v183 = vunpack.c.h.b16 %v93
    %v184 = vunpack.c.l.b16 %v94
    %v185 = vpack.c.b16 %v140, %v137
    %v186 = vpack.c.b16 %v141, %v138
    %v187 = vpack.c.b16 %v142, %v139
    %v188 = vpack.c.b16 %v146, %v143
    %v189 = vpack.c.b16 %v147, %v144
    %v190 = vpack.c.b16 %v148, %v145
    %v191 = vpack.c.b16 %v152, %v149
    %v192 = vpack.c.b16 %v153, %v150
    %v193 = vpack.c.b16 %v154, %v151
    %v194 = vpack.c.b16 %v158, %v155
    %v195 = vpack.c.b16 %v159, %v156
    %v196 = vpack.c.b16 %v160, %v157
    %v197 = vpack.c.b16 %v164, %v161
    %v198 = vpack.c.b16 %v165, %v162
    %v199 = vpack.c.b16 %v166, %v163
    %v200 = vpack.c.b16 %v170, %v167
    %v201 = vpack.c.b16 %v171, %v168
    %v202 = vpack.c.b16 %v172, %v169
    %v203 = vpack.c.b16 %v176, %v173
    %v204 = vpack.c.b16 %v177, %v174
    %v205 = vpack.c.b16 %v178, %v175
    %v206 = vpack.c.b16 %v182, %v179
    %v207 = vpack.c.b16 %v183, %v180
    %v208 = vpack.c.b16 %v184, %v181
    %233 = vmatprep.subr.bf16.mxu0 %v186
    %234 = vmatpush1.bf16.msra.mxu0 %v185
    %235 = vmatprep.subr.bf16.mxu0 %v189
    %236 = vmatpush1.bf16.msra.mxu0 %v188
    %237 = vmatprep.subr.bf16.mxu0 %v192
    %238 = vmatpush1.bf16.msra.mxu0 %v191
    %239 = vmatprep.subr.bf16.mxu0 %v195
    %240 = vmatpush1.bf16.msra.mxu0 %v194
    %241 = vmatprep.subr.bf16.mxu0 %v198
    %242 = vmatpush1.bf16.msra.mxu0 %v197
    %243 = vmatprep.subr.bf16.mxu0 %v201
    %244 = vmatpush1.bf16.msra.mxu0 %v200
    %245 = vmatprep.subr.bf16.mxu0 %v204
    %246 = vmatpush1.bf16.msra.mxu0 %v203
    %247 = vmatprep.subr.bf16.mxu0 %v207
    %248 = vmatpush1.bf16.msra.mxu0 %v206
    %249 = vmatprep.subr.bf16.mxu0 0
    %250 = vmatpush1.bf16.msra.mxu0 0
    %251 = vmatprep.subr.bf16.mxu0 0
    %252 = vmatpush1.bf16.msra.mxu0 0
    %253 = vmatprep.subr.bf16.mxu0 0
    %254 = vmatpush1.bf16.msra.mxu0 0
    %255 = vmatprep.subr.bf16.mxu0 0
    %256 = vmatpush1.bf16.msra.mxu0 0
    %257 = vmatprep.subr.bf16.mxu0 0
    %258 = vmatpush1.bf16.msra.mxu0 0
    %259 = vmatprep.subr.bf16.mxu0 0
    %260 = vmatpush1.bf16.msra.mxu0 0
    %261 = vmatprep.subr.bf16.mxu0 0
    %262 = vmatpush1.bf16.msra.mxu0 0
    %263 = vmatprep.subr.bf16.mxu0 0
    %264 = vmatpush1.bf16.msra.mxu0 0
    %265 = vmatprep.mubr.bf16.mxu0 0
    %266 = vmatmul.mubr.bf16.gmra.mrb[0].mxu0 0
    %v267 = vpop.f32.mrb[0].mxu0
    %v268 = vadd.f32 0.0, %v267
    %v269 = vpop.f32.mrb[0].mxu0
    %v270 = vadd.f32 0.0, %v269
    %v271 = vpop.f32.mrb[0].mxu0
    %v272 = vpop.f32.mrb[0].mxu0
    %273 = vdwg.mxu0
    %274 = vmatprep.subr.bf16.mxu0 0
    %275 = vmatpush1.bf16.msra.mxu0 %v187
    %276 = vmatprep.subr.bf16.mxu0 0
    %277 = vmatpush1.bf16.msra.mxu0 %v190
    %278 = vmatprep.subr.bf16.mxu0 0
    %279 = vmatpush1.bf16.msra.mxu0 %v193
    %280 = vmatprep.subr.bf16.mxu0 0
    %281 = vmatpush1.bf16.msra.mxu0 %v196
    %282 = vmatprep.subr.bf16.mxu0 0
    %283 = vmatpush1.bf16.msra.mxu0 %v199
    %284 = vmatprep.subr.bf16.mxu0 0
    %285 = vmatpush1.bf16.msra.mxu0 %v202
    %286 = vmatprep.subr.bf16.mxu0 0
    %287 = vmatpush1.bf16.msra.mxu0 %v205
    %288 = vmatprep.subr.bf16.mxu0 0
    %289 = vmatpush1.bf16.msra.mxu0 %v208
    %290 = vmatprep.subr.bf16.mxu0 0
    %291 = vmatpush1.bf16.msra.mxu0 0
    %292 = vmatprep.subr.bf16.mxu0 0
    %293 = vmatpush1.bf16.msra.mxu0 0
    %294 = vmatprep.subr.bf16.mxu0 0
    %295 = vmatpush1.bf16.msra.mxu0 0
    %296 = vmatprep.subr.bf16.mxu0 0
    %297 = vmatpush1.bf16.msra.mxu0 0
    %298 = vmatprep.subr.bf16.mxu0 0
    %299 = vmatpush1.bf16.msra.mxu0 0
    %300 = vmatprep.subr.bf16.mxu0 0
    %301 = vmatpush1.bf16.msra.mxu0 0
    %302 = vmatprep.subr.bf16.mxu0 0
    %303 = vmatpush1.bf16.msra.mxu0 0
    %304 = vmatprep.subr.bf16.mxu0 0
    %305 = vmatpush1.bf16.msra.mxu0 0
    %306 = vmatprep.mubr.bf16.mxu0 0
    %307 = vmatmul.mubr.bf16.gmra.mrb[0].mxu0 0
    %v308 = vpop.f32.mrb[0].mxu0
    %v309 = vadd.f32 0.0, %v308
    %v310 = vpop.f32.mrb[0].mxu0
    %v311 = vpop.f32.mrb[0].mxu0
    %v312 = vpop.f32.mrb[0].mxu0
    %313 = vdwg.mxu0
    %v314 = vadd.f32 %v102, %v268
    %v315 = vadd.f32 %v103, %v270
    %v316 = vxor.u32 %v314, 2147483648
    %v317 = vxor.u32 %v315, 2147483648
    %v318 = vmul.f32 %v316, 1.442695
    %v319 = vpow.pop %v318
    %v320 = vmul.f32 %v317, 1.442695
    %v321 = vpow.pop %v320
    %v322 = vadd.f32 %v319, 1.0
    %v323 = vadd.f32 %v321, 1.0
    %v324 = vrcp.pop %v322
    %v325 = vmul.f32 1.0, %v324
    %v326 = vrcp.pop %v323
    %v327 = vmul.f32 1.0, %v326
    %v328 = vadd.f32 %v309, %v100
    %v329 = vmul.f32 %v325, %v328
    %v330 = vadd.f32 %v104, %v329
    %v331 = vtanh.pop %v330
    %v332 = vsub.f32 0.0, %v331
    %v333 = vmul.f32 %v327, %v332
    %v334 = vadd.f32 %v331, %v333
    %s335 = scalar_lea.vmem [#allocation2], 24
    %v336 = vld [vmem:[%s335] sm:$0xff]
    %v337 = vld [vmem:[%s335 + $0x8] sm:$0xff]
    %v338 = vld [vmem:[%s335 + $0x10] sm:$0xff]
    %v339 = vpack.c.bf16 %v334, %v334
    %340 = vmatprep.subr.bf16.mxu0 %v186
    %341 = vmatpush1.bf16.msra.mxu0 %v185
    %342 = vmatprep.subr.bf16.mxu0 %v189
    %343 = vmatpush1.bf16.msra.mxu0 %v188
    %344 = vmatprep.subr.bf16.mxu0 %v192
    %345 = vmatpush1.bf16.msra.mxu0 %v191
    %346 = vmatprep.subr.bf16.mxu0 %v195
    %347 = vmatpush1.bf16.msra.mxu0 %v194
    %348 = vmatprep.subr.bf16.mxu0 %v198
    %349 = vmatpush1.bf16.msra.mxu0 %v197
    %350 = vmatprep.subr.bf16.mxu0 %v201
    %351 = vmatpush1.bf16.msra.mxu0 %v200
    %352 = vmatprep.subr.bf16.mxu0 %v204
    %353 = vmatpush1.bf16.msra.mxu0 %v203
    %354 = vmatprep.subr.bf16.mxu0 %v207
    %355 = vmatpush1.bf16.msra.mxu0 %v206
    %356 = vmatprep.subr.bf16.mxu0 0
    %357 = vmatpush1.bf16.msra.mxu0 0
    %358 = vmatprep.subr.bf16.mxu0 0
    %359 = vmatpush1.bf16.msra.mxu0 0
    %360 = vmatprep.subr.bf16.mxu0 0
    %361 = vmatpush1.bf16.msra.mxu0 0
    %362 = vmatprep.subr.bf16.mxu0 0
    %363 = vmatpush1.bf16.msra.mxu0 0
    %364 = vmatprep.subr.bf16.mxu0 0
    %365 = vmatpush1.bf16.msra.mxu0 0
    %366 = vmatprep.subr.bf16.mxu0 0
    %367 = vmatpush1.bf16.msra.mxu0 0
    %368 = vmatprep.subr.bf16.mxu0 0
    %369 = vmatpush1.bf16.msra.mxu0 0
    %370 = vmatprep.subr.bf16.mxu0 0
    %371 = vmatpush1.bf16.msra.mxu0 0
    %372 = vmatprep.mubr.bf16.mxu0 0
    %373 = vmatmul.mubr.bf16.gmra.mrb[0].mxu0 %v339
    %v374 = vpop.f32.mrb[0].mxu0
    %v375 = vadd.f32 0.0, %v374
    %v376 = vpop.f32.mrb[0].mxu0
    %v377 = vadd.f32 0.0, %v376
    %v378 = vpop.f32.mrb[0].mxu0
    %v379 = vpop.f32.mrb[0].mxu0
    %380 = vdwg.mxu0
    %381 = vmatprep.subr.bf16.mxu0 0
    %382 = vmatpush1.bf16.msra.mxu0 %v187
    %383 = vmatprep.subr.bf16.mxu0 0
    %384 = vmatpush1.bf16.msra.mxu0 %v190
    %385 = vmatprep.subr.bf16.mxu0 0
    %386 = vmatpush1.bf16.msra.mxu0 %v193
    %387 = vmatprep.subr.bf16.mxu0 0
    %388 = vmatpush1.bf16.msra.mxu0 %v196
    %389 = vmatprep.subr.bf16.mxu0 0
    %390 = vmatpush1.bf16.msra.mxu0 %v199
    %391 = vmatprep.subr.bf16.mxu0 0
    %392 = vmatpush1.bf16.msra.mxu0 %v202
    %393 = vmatprep.subr.bf16.mxu0 0
    %394 = vmatpush1.bf16.msra.mxu0 %v205
    %395 = vmatprep.subr.bf16.mxu0 0
    %396 = vmatpush1.bf16.msra.mxu0 %v208
    %397 = vmatprep.subr.bf16.mxu0 0
    %398 = vmatpush1.bf16.msra.mxu0 0
    %399 = vmatprep.subr.bf16.mxu0 0
    %400 = vmatpush1.bf16.msra.mxu0 0
    %401 = vmatprep.subr.bf16.mxu0 0
    %402 = vmatpush1.bf16.msra.mxu0 0
    %403 = vmatprep.subr.bf16.mxu0 0
    %404 = vmatpush1.bf16.msra.mxu0 0
    %405 = vmatprep.subr.bf16.mxu0 0
    %406 = vmatpush1.bf16.msra.mxu0 0
    %407 = vmatprep.subr.bf16.mxu0 0
    %408 = vmatpush1.bf16.msra.mxu0 0
    %409 = vmatprep.subr.bf16.mxu0 0
    %410 = vmatpush1.bf16.msra.mxu0 0
    %411 = vmatprep.subr.bf16.mxu0 0
    %412 = vmatpush1.bf16.msra.mxu0 0
    %413 = vmatprep.mubr.bf16.mxu0 0
    %414 = vmatmul.mubr.bf16.gmra.mrb[0].mxu0 %v339
    %v415 = vpop.f32.mrb[0].mxu0
    %v416 = vadd.f32 0.0, %v415
    %v417 = vpop.f32.mrb[0].mxu0
    %v418 = vpop.f32.mrb[0].mxu0
    %v419 = vpop.f32.mrb[0].mxu0
    %420 = vdwg.mxu0
    %v421 = vadd.f32 %v336, %v375
    %v422 = vadd.f32 %v337, %v377
    %v423 = vxor.u32 %v421, 2147483648
    %v424 = vxor.u32 %v422, 2147483648
    %v425 = vmul.f32 %v423, 1.442695
    %v426 = vpow.pop %v425
    %v427 = vmul.f32 %v424, 1.442695
    %v428 = vpow.pop %v427
    %v429 = vadd.f32 %v426, 1.0
    %v430 = vadd.f32 %v428, 1.0
    %v431 = vrcp.pop %v429
    %v432 = vmul.f32 1.0, %v431
    %v433 = vrcp.pop %v430
    %v434 = vmul.f32 1.0, %v433
    %v435 = vadd.f32 %v416, %v100
    %v436 = vmul.f32 %v432, %v435
    %v437 = vadd.f32 %v338, %v436
    %v438 = vtanh.pop %v437
    %v439 = vsub.f32 %v334, %v438
    %v440 = vmul.f32 %v434, %v439
    %v441 = vadd.f32 %v438, %v440
    %s442 = scalar_lea.vmem [#allocation2], 48
    %v443 = vld [vmem:[%s442] sm:$0xff]
    %v444 = vld [vmem:[%s442 + $0x8] sm:$0xff]
    %v445 = vld [vmem:[%s442 + $0x10] sm:$0xff]
    %v446 = vpack.c.bf16 %v441, %v441
    %447 = vmatprep.subr.bf16.mxu0 %v186
    %448 = vmatpush1.bf16.msra.mxu0 %v185
    %449 = vmatprep.subr.bf16.mxu0 %v189
    %450 = vmatpush1.bf16.msra.mxu0 %v188
    %451 = vmatprep.subr.bf16.mxu0 %v192
    %452 = vmatpush1.bf16.msra.mxu0 %v191
    %453 = vmatprep.subr.bf16.mxu0 %v195
    %454 = vmatpush1.bf16.msra.mxu0 %v194
    %455 = vmatprep.subr.bf16.mxu0 %v198
    %456 = vmatpush1.bf16.msra.mxu0 %v197
    %457 = vmatprep.subr.bf16.mxu0 %v201
    %458 = vmatpush1.bf16.msra.mxu0 %v200
    %459 = vmatprep.subr.bf16.mxu0 %v204
    %460 = vmatpush1.bf16.msra.mxu0 %v203
    %461 = vmatprep.subr.bf16.mxu0 %v207
    %462 = vmatpush1.bf16.msra.mxu0 %v206
    %463 = vmatprep.subr.bf16.mxu0 0
    %464 = vmatpush1.bf16.msra.mxu0 0
    %465 = vmatprep.subr.bf16.mxu0 0
    %466 = vmatpush1.bf16.msra.mxu0 0
    %467 = vmatprep.subr.bf16.mxu0 0
    %468 = vmatpush1.bf16.msra.mxu0 0
    %469 = vmatprep.subr.bf16.mxu0 0
    %470 = vmatpush1.bf16.msra.mxu0 0
    %471 = vmatprep.subr.bf16.mxu0 0
    %472 = vmatpush1.bf16.msra.mxu0 0
    %473 = vmatprep.subr.bf16.mxu0 0
    %474 = vmatpush1.bf16.msra.mxu0 0
    %475 = vmatprep.subr.bf16.mxu0 0
    %476 = vmatpush1.bf16.msra.mxu0 0
    %477 = vmatprep.subr.bf16.mxu0 0
    %478 = vmatpush1.bf16.msra.mxu0 0
    %479 = vmatprep.mubr.bf16.mxu0 0
    %480 = vmatmul.mubr.bf16.gmra.mrb[0].mxu0 %v446
    %v481 = vpop.f32.mrb[0].mxu0
    %v482 = vadd.f32 0.0, %v481
    %v483 = vpop.f32.mrb[0].mxu0
    %v484 = vadd.f32 0.0, %v483
    %v485 = vpop.f32.mrb[0].mxu0
    %v486 = vpop.f32.mrb[0].mxu0
    %487 = vdwg.mxu0
    %488 = vmatprep.subr.bf16.mxu0 0
    %489 = vmatpush1.bf16.msra.mxu0 %v187
    %490 = vmatprep.subr.bf16.mxu0 0
    %491 = vmatpush1.bf16.msra.mxu0 %v190
    %492 = vmatprep.subr.bf16.mxu0 0
    %493 = vmatpush1.bf16.msra.mxu0 %v193
    %494 = vmatprep.subr.bf16.mxu0 0
    %495 = vmatpush1.bf16.msra.mxu0 %v196
    %496 = vmatprep.subr.bf16.mxu0 0
    %497 = vmatpush1.bf16.msra.mxu0 %v199
    %498 = vmatprep.subr.bf16.mxu0 0
    %499 = vmatpush1.bf16.msra.mxu0 %v202
    %500 = vmatprep.subr.bf16.mxu0 0
    %501 = vmatpush1.bf16.msra.mxu0 %v205
    %502 = vmatprep.subr.bf16.mxu0 0
    %503 = vmatpush1.bf16.msra.mxu0 %v208
    %504 = vmatprep.subr.bf16.mxu0 0
    %505 = vmatpush1.bf16.msra.mxu0 0
    %506 = vmatprep.subr.bf16.mxu0 0
    %507 = vmatpush1.bf16.msra.mxu0 0
    %508 = vmatprep.subr.bf16.mxu0 0
    %509 = vmatpush1.bf16.msra.mxu0 0
    %510 = vmatprep.subr.bf16.mxu0 0
    %511 = vmatpush1.bf16.msra.mxu0 0
    %512 = vmatprep.subr.bf16.mxu0 0
    %513 = vmatpush1.bf16.msra.mxu0 0
    %514 = vmatprep.subr.bf16.mxu0 0
    %515 = vmatpush1.bf16.msra.mxu0 0
    %516 = vmatprep.subr.bf16.mxu0 0
    %517 = vmatpush1.bf16.msra.mxu0 0
    %518 = vmatprep.subr.bf16.mxu0 0
    %519 = vmatpush1.bf16.msra.mxu0 0
    %520 = vmatprep.mubr.bf16.mxu0 0
    %521 = vmatmul.mubr.bf16.gmra.mrb[0].mxu0 %v446
    %v522 = vpop.f32.mrb[0].mxu0
    %v523 = vadd.f32 0.0, %v522
    %v524 = vpop.f32.mrb[0].mxu0
    %v525 = vpop.f32.mrb[0].mxu0
    %v526 = vpop.f32.mrb[0].mxu0
    %527 = vdwg.mxu0
    %v528 = vadd.f32 %v443, %v482
    %v529 = vadd.f32 %v444, %v484
    %v530 = vxor.u32 %v528, 2147483648
    %v531 = vxor.u32 %v529, 2147483648
    %v532 = vmul.f32 %v530, 1.442695
    %v533 = vpow.pop %v532
    %v534 = vmul.f32 %v531, 1.442695
    %v535 = vpow.pop %v534
    %v536 = vadd.f32 %v533, 1.0
    %v537 = vadd.f32 %v535, 1.0
    %v538 = vrcp.pop %v536
    %v539 = vmul.f32 1.0, %v538
    %v540 = vrcp.pop %v537
    %v541 = vmul.f32 1.0, %v540
    %v542 = vadd.f32 %v523, %v100
    %v543 = vmul.f32 %v539, %v542
    %v544 = vadd.f32 %v445, %v543
    %v545 = vtanh.pop %v544
    %v546 = vsub.f32 %v441, %v545
    %v547 = vmul.f32 %v541, %v546
    %v548 = vadd.f32 %v545, %v547
    %s549 = scalar_lea.vmem [#allocation2], 72
    %v550 = vld [vmem:[%s549] sm:$0xff]
    %v551 = vld [vmem:[%s549 + $0x8] sm:$0xff]
    %v552 = vld [vmem:[%s549 + $0x10] sm:$0xff]
    %v553 = vpack.c.bf16 %v548, %v548
    %554 = vmatprep.subr.bf16.mxu0 %v186
    %555 = vmatpush1.bf16.msra.mxu0 %v185
    %556 = vmatprep.subr.bf16.mxu0 %v189
    %557 = vmatpush1.bf16.msra.mxu0 %v188
    %558 = vmatprep.subr.bf16.mxu0 %v192
    %559 = vmatpush1.bf16.msra.mxu0 %v191
    %560 = vmatprep.subr.bf16.mxu0 %v195
    %561 = vmatpush1.bf16.msra.mxu0 %v194
    %562 = vmatprep.subr.bf16.mxu0 %v198
    %563 = vmatpush1.bf16.msra.mxu0 %v197
    %564 = vmatprep.subr.bf16.mxu0 %v201
    %565 = vmatpush1.bf16.msra.mxu0 %v200
    %566 = vmatprep.subr.bf16.mxu0 %v204
    %567 = vmatpush1.bf16.msra.mxu0 %v203
    %568 = vmatprep.subr.bf16.mxu0 %v207
    %569 = vmatpush1.bf16.msra.mxu0 %v206
    %570 = vmatprep.subr.bf16.mxu0 0
    %571 = vmatpush1.bf16.msra.mxu0 0
    %572 = vmatprep.subr.bf16.mxu0 0
    %573 = vmatpush1.bf16.msra.mxu0 0
    %574 = vmatprep.subr.bf16.mxu0 0
    %575 = vmatpush1.bf16.msra.mxu0 0
    %576 = vmatprep.subr.bf16.mxu0 0
    %577 = vmatpush1.bf16.msra.mxu0 0
    %578 = vmatprep.subr.bf16.mxu0 0
    %579 = vmatpush1.bf16.msra.mxu0 0
    %580 = vmatprep.subr.bf16.mxu0 0
    %581 = vmatpush1.bf16.msra.mxu0 0
    %582 = vmatprep.subr.bf16.mxu0 0
    %583 = vmatpush1.bf16.msra.mxu0 0
    %584 = vmatprep.subr.bf16.mxu0 0
    %585 = vmatpush1.bf16.msra.mxu0 0
    %586 = vmatprep.mubr.bf16.mxu0 0
    %587 = vmatmul.mubr.bf16.gmra.mrb[0].mxu0 %v553
    %v588 = vpop.f32.mrb[0].mxu0
    %v589 = vadd.f32 0.0, %v588
    %v590 = vpop.f32.mrb[0].mxu0
    %v591 = vadd.f32 0.0, %v590
    %v592 = vpop.f32.mrb[0].mxu0
    %v593 = vpop.f32.mrb[0].mxu0
    %594 = vdwg.mxu0
    %595 = vmatprep.subr.bf16.mxu0 0
    %596 = vmatpush1.bf16.msra.mxu0 %v187
    %597 = vmatprep.subr.bf16.mxu0 0
    %598 = vmatpush1.bf16.msra.mxu0 %v190
    %599 = vmatprep.subr.bf16.mxu0 0
    %600 = vmatpush1.bf16.msra.mxu0 %v193
    %601 = vmatprep.subr.bf16.mxu0 0
    %602 = vmatpush1.bf16.msra.mxu0 %v196
    %603 = vmatprep.subr.bf16.mxu0 0
    %604 = vmatpush1.bf16.msra.mxu0 %v199
    %605 = vmatprep.subr.bf16.mxu0 0
    %606 = vmatpush1.bf16.msra.mxu0 %v202
    %607 = vmatprep.subr.bf16.mxu0 0
    %608 = vmatpush1.bf16.msra.mxu0 %v205
    %609 = vmatprep.subr.bf16.mxu0 0
    %610 = vmatpush1.bf16.msra.mxu0 %v208
    %611 = vmatprep.subr.bf16.mxu0 0
    %612 = vmatpush1.bf16.msra.mxu0 0
    %613 = vmatprep.subr.bf16.mxu0 0
    %614 = vmatpush1.bf16.msra.mxu0 0
    %615 = vmatprep.subr.bf16.mxu0 0
    %616 = vmatpush1.bf16.msra.mxu0 0
    %617 = vmatprep.subr.bf16.mxu0 0
    %618 = vmatpush1.bf16.msra.mxu0 0
    %619 = vmatprep.subr.bf16.mxu0 0
    %620 = vmatpush1.bf16.msra.mxu0 0
    %621 = vmatprep.subr.bf16.mxu0 0
    %622 = vmatpush1.bf16.msra.mxu0 0
    %623 = vmatprep.subr.bf16.mxu0 0
    %624 = vmatpush1.bf16.msra.mxu0 0
    %625 = vmatprep.subr.bf16.mxu0 0
    %626 = vmatpush1.bf16.msra.mxu0 0
    %627 = vmatprep.mubr.bf16.mxu0 0
    %628 = vmatmul.mubr.bf16.gmra.mrb[0].mxu0 %v553
    %v629 = vpop.f32.mrb[0].mxu0
    %v630 = vadd.f32 0.0, %v629
    %v631 = vpop.f32.mrb[0].mxu0
    %v632 = vpop.f32.mrb[0].mxu0
    %v633 = vpop.f32.mrb[0].mxu0
    %634 = vdwg.mxu0
    %v635 = vadd.f32 %v550, %v589
    %v636 = vadd.f32 %v551, %v591
    %v637 = vxor.u32 %v635, 2147483648
    %v638 = vxor.u32 %v636, 2147483648
    %v639 = vmul.f32 %v637, 1.442695
    %v640 = vpow.pop %v639
    %v641 = vmul.f32 %v638, 1.442695
    %v642 = vpow.pop %v641
    %v643 = vadd.f32 %v640, 1.0
    %v644 = vadd.f32 %v642, 1.0
    %v645 = vrcp.pop %v643
    %v646 = vmul.f32 1.0, %v645
    %v647 = vrcp.pop %v644
    %v648 = vmul.f32 1.0, %v647
    %v649 = vadd.f32 %v630, %v100
    %v650 = vmul.f32 %v646, %v649
    %v651 = vadd.f32 %v552, %v650
    %v652 = vtanh.pop %v651
    %v653 = vsub.f32 %v548, %v652
    %v654 = vmul.f32 %v648, %v653
    %v655 = vadd.f32 %v652, %v654
    %s656 = scalar_lea.vmem [#allocation2], 96
    %v657 = vld [vmem:[%s656] sm:$0xff]
    %v658 = vld [vmem:[%s656 + $0x8] sm:$0xff]
    %v659 = vld [vmem:[%s656 + $0x10] sm:$0xff]
    %v660 = vpack.c.bf16 %v655, %v655
    %661 = vmatprep.subr.bf16.mxu0 %v186
    %662 = vmatpush1.bf16.msra.mxu0 %v185
    %663 = vmatprep.subr.bf16.mxu0 %v189
    %664 = vmatpush1.bf16.msra.mxu0 %v188
    %665 = vmatprep.subr.bf16.mxu0 %v192
    %666 = vmatpush1.bf16.msra.mxu0 %v191
    %667 = vmatprep.subr.bf16.mxu0 %v195
    %668 = vmatpush1.bf16.msra.mxu0 %v194
    %669 = vmatprep.subr.bf16.mxu0 %v198
    %670 = vmatpush1.bf16.msra.mxu0 %v197
    %671 = vmatprep.subr.bf16.mxu0 %v201
    %672 = vmatpush1.bf16.msra.mxu0 %v200
    %673 = vmatprep.subr.bf16.mxu0 %v204
    %674 = vmatpush1.bf16.msra.mxu0 %v203
    %675 = vmatprep.subr.bf16.mxu0 %v207
    %676 = vmatpush1.bf16.msra.mxu0 %v206
    %677 = vmatprep.subr.bf16.mxu0 0
    %678 = vmatpush1.bf16.msra.mxu0 0
    %679 = vmatprep.subr.bf16.mxu0 0
    %680 = vmatpush1.bf16.msra.mxu0 0
    %681 = vmatprep.subr.bf16.mxu0 0
    %682 = vmatpush1.bf16.msra.mxu0 0
    %683 = vmatprep.subr.bf16.mxu0 0
    %684 = vmatpush1.bf16.msra.mxu0 0
    %685 = vmatprep.subr.bf16.mxu0 0
    %686 = vmatpush1.bf16.msra.mxu0 0
    %687 = vmatprep.subr.bf16.mxu0 0
    %688 = vmatpush1.bf16.msra.mxu0 0
    %689 = vmatprep.subr.bf16.mxu0 0
    %690 = vmatpush1.bf16.msra.mxu0 0
    %691 = vmatprep.subr.bf16.mxu0 0
    %692 = vmatpush1.bf16.msra.mxu0 0
    %693 = vmatprep.mubr.bf16.mxu0 0
    %694 = vmatmul.mubr.bf16.gmra.mrb[0].mxu0 %v660
    %v695 = vpop.f32.mrb[0].mxu0
    %v696 = vadd.f32 0.0, %v695
    %v697 = vpop.f32.mrb[0].mxu0
    %v698 = vadd.f32 0.0, %v697
    %v699 = vpop.f32.mrb[0].mxu0
    %v700 = vpop.f32.mrb[0].mxu0
    %701 = vdwg.mxu0
    %702 = vmatprep.subr.bf16.mxu0 0
    %703 = vmatpush1.bf16.msra.mxu0 %v187
    %704 = vmatprep.subr.bf16.mxu0 0
    %705 = vmatpush1.bf16.msra.mxu0 %v190
    %706 = vmatprep.subr.bf16.mxu0 0
    %707 = vmatpush1.bf16.msra.mxu0 %v193
    %708 = vmatprep.subr.bf16.mxu0 0
    %709 = vmatpush1.bf16.msra.mxu0 %v196
    %710 = vmatprep.subr.bf16.mxu0 0
    %711 = vmatpush1.bf16.msra.mxu0 %v199
    %712 = vmatprep.subr.bf16.mxu0 0
    %713 = vmatpush1.bf16.msra.mxu0 %v202
    %714 = vmatprep.subr.bf16.mxu0 0
    %715 = vmatpush1.bf16.msra.mxu0 %v205
    %716 = vmatprep.subr.bf16.mxu0 0
    %717 = vmatpush1.bf16.msra.mxu0 %v208
    %718 = vmatprep.subr.bf16.mxu0 0
    %719 = vmatpush1.bf16.msra.mxu0 0
    %720 = vmatprep.subr.bf16.mxu0 0
    %721 = vmatpush1.bf16.msra.mxu0 0
    %722 = vmatprep.subr.bf16.mxu0 0
    %723 = vmatpush1.bf16.msra.mxu0 0
    %724 = vmatprep.subr.bf16.mxu0 0
    %725 = vmatpush1.bf16.msra.mxu0 0
    %726 = vmatprep.subr.bf16.mxu0 0
    %727 = vmatpush1.bf16.msra.mxu0 0
    %728 = vmatprep.subr.bf16.mxu0 0
    %729 = vmatpush1.bf16.msra.mxu0 0
    %730 = vmatprep.subr.bf16.mxu0 0
    %731 = vmatpush1.bf16.msra.mxu0 0
    %732 = vmatprep.subr.bf16.mxu0 0
    %733 = vmatpush1.bf16.msra.mxu0 0
    %734 = vmatprep.mubr.bf16.mxu0 0
    %735 = vmatmul.mubr.bf16.gmra.mrb[0].mxu0 %v660
    %v736 = vpop.f32.mrb[0].mxu0
    %v737 = vadd.f32 0.0, %v736
    %v738 = vpop.f32.mrb[0].mxu0
    %v739 = vpop.f32.mrb[0].mxu0
    %v740 = vpop.f32.mrb[0].mxu0
    %741 = vdwg.mxu0
    %v742 = vadd.f32 %v657, %v696
    %v743 = vadd.f32 %v658, %v698
    %v744 = vxor.u32 %v742, 2147483648
    %v745 = vxor.u32 %v743, 2147483648
    %v746 = vmul.f32 %v744, 1.442695
    %v747 = vpow.pop %v746
    %v748 = vmul.f32 %v745, 1.442695
    %v749 = vpow.pop %v748
    %v750 = vadd.f32 %v747, 1.0
    %v751 = vadd.f32 %v749, 1.0
    %v752 = vrcp.pop %v750
    %v753 = vmul.f32 1.0, %v752
    %v754 = vrcp.pop %v751
    %v755 = vmul.f32 1.0, %v754
    %v756 = vadd.f32 %v737, %v100
    %v757 = vmul.f32 %v753, %v756
    %v758 = vadd.f32 %v659, %v757
    %v759 = vtanh.pop %v758
    %v760 = vsub.f32 %v655, %v759
    %v761 = vmul.f32 %v755, %v760
    %v762 = vadd.f32 %v759, %v761
    %s763 = scalar_lea.vmem [#allocation2], 120
    %v764 = vld [vmem:[%s763] sm:$0xff]
    %v765 = vld [vmem:[%s763 + $0x8] sm:$0xff]
    %v766 = vld [vmem:[%s763 + $0x10] sm:$0xff]
    %v767 = vpack.c.bf16 %v762, %v762
    %768 = vmatprep.subr.bf16.mxu0 %v186
    %769 = vmatpush1.bf16.msra.mxu0 %v185
    %770 = vmatprep.subr.bf16.mxu0 %v189
    %771 = vmatpush1.bf16.msra.mxu0 %v188
    %772 = vmatprep.subr.bf16.mxu0 %v192
    %773 = vmatpush1.bf16.msra.mxu0 %v191
    %774 = vmatprep.subr.bf16.mxu0 %v195
    %775 = vmatpush1.bf16.msra.mxu0 %v194
    %776 = vmatprep.subr.bf16.mxu0 %v198
    %777 = vmatpush1.bf16.msra.mxu0 %v197
    %778 = vmatprep.subr.bf16.mxu0 %v201
    %779 = vmatpush1.bf16.msra.mxu0 %v200
    %780 = vmatprep.subr.bf16.mxu0 %v204
    %781 = vmatpush1.bf16.msra.mxu0 %v203
    %782 = vmatprep.subr.bf16.mxu0 %v207
    %783 = vmatpush1.bf16.msra.mxu0 %v206
    %784 = vmatprep.subr.bf16.mxu0 0
    %785 = vmatpush1.bf16.msra.mxu0 0
    %786 = vmatprep.subr.bf16.mxu0 0
    %787 = vmatpush1.bf16.msra.mxu0 0
    %788 = vmatprep.subr.bf16.mxu0 0
    %789 = vmatpush1.bf16.msra.mxu0 0
    %790 = vmatprep.subr.bf16.mxu0 0
    %791 = vmatpush1.bf16.msra.mxu0 0
    %792 = vmatprep.subr.bf16.mxu0 0
    %793 = vmatpush1.bf16.msra.mxu0 0
    %794 = vmatprep.subr.bf16.mxu0 0
    %795 = vmatpush1.bf16.msra.mxu0 0
    %796 = vmatprep.subr.bf16.mxu0 0
    %797 = vmatpush1.bf16.msra.mxu0 0
    %798 = vmatprep.subr.bf16.mxu0 0
    %799 = vmatpush1.bf16.msra.mxu0 0
    %800 = vmatprep.mubr.bf16.mxu0 0
    %801 = vmatmul.mubr.bf16.gmra.mrb[0].mxu0 %v767
    %v802 = vpop.f32.mrb[0].mxu0
    %v803 = vadd.f32 0.0, %v802
    %v804 = vpop.f32.mrb[0].mxu0
    %v805 = vadd.f32 0.0, %v804
    %v806 = vpop.f32.mrb[0].mxu0
    %v807 = vpop.f32.mrb[0].mxu0
    %808 = vdwg.mxu0
    %809 = vmatprep.subr.bf16.mxu0 0
    %810 = vmatpush1.bf16.msra.mxu0 %v187
    %811 = vmatprep.subr.bf16.mxu0 0
    %812 = vmatpush1.bf16.msra.mxu0 %v190
    %813 = vmatprep.subr.bf16.mxu0 0
    %814 = vmatpush1.bf16.msra.mxu0 %v193
    %815 = vmatprep.subr.bf16.mxu0 0
    %816 = vmatpush1.bf16.msra.mxu0 %v196
    %817 = vmatprep.subr.bf16.mxu0 0
    %818 = vmatpush1.bf16.msra.mxu0 %v199
    %819 = vmatprep.subr.bf16.mxu0 0
    %820 = vmatpush1.bf16.msra.mxu0 %v202
    %821 = vmatprep.subr.bf16.mxu0 0
    %822 = vmatpush1.bf16.msra.mxu0 %v205
    %823 = vmatprep.subr.bf16.mxu0 0
    %824 = vmatpush1.bf16.msra.mxu0 %v208
    %825 = vmatprep.subr.bf16.mxu0 0
    %826 = vmatpush1.bf16.msra.mxu0 0
    %827 = vmatprep.subr.bf16.mxu0 0
    %828 = vmatpush1.bf16.msra.mxu0 0
    %829 = vmatprep.subr.bf16.mxu0 0
    %830 = vmatpush1.bf16.msra.mxu0 0
    %831 = vmatprep.subr.bf16.mxu0 0
    %832 = vmatpush1.bf16.msra.mxu0 0
    %833 = vmatprep.subr.bf16.mxu0 0
    %834 = vmatpush1.bf16.msra.mxu0 0
    %835 = vmatprep.subr.bf16.mxu0 0
    %836 = vmatpush1.bf16.msra.mxu0 0
    %837 = vmatprep.subr.bf16.mxu0 0
    %838 = vmatpush1.bf16.msra.mxu0 0
    %839 = vmatprep.subr.bf16.mxu0 0
    %840 = vmatpush1.bf16.msra.mxu0 0
    %841 = vmatprep.mubr.bf16.mxu0 0
    %842 = vmatmul.mubr.bf16.gmra.mrb[0].mxu0 %v767
    %v843 = vpop.f32.mrb[0].mxu0
    %v844 = vadd.f32 0.0, %v843
    %v845 = vpop.f32.mrb[0].mxu0
    %v846 = vpop.f32.mrb[0].mxu0
    %v847 = vpop.f32.mrb[0].mxu0
    %848 = vdwg.mxu0
    %v849 = vadd.f32 %v764, %v803
    %v850 = vadd.f32 %v765, %v805
    %v851 = vxor.u32 %v849, 2147483648
    %v852 = vxor.u32 %v850, 2147483648
    %v853 = vmul.f32 %v851, 1.442695
    %v854 = vpow.pop %v853
    %v855 = vmul.f32 %v852, 1.442695
    %v856 = vpow.pop %v855
    %v857 = vadd.f32 %v854, 1.0
    %v858 = vadd.f32 %v856, 1.0
    %v859 = vrcp.pop %v857
    %v860 = vmul.f32 1.0, %v859
    %v861 = vrcp.pop %v858
    %v862 = vmul.f32 1.0, %v861
    %v863 = vadd.f32 %v844, %v100
    %v864 = vmul.f32 %v860, %v863
    %v865 = vadd.f32 %v766, %v864
    %v866 = vtanh.pop %v865
    %v867 = vsub.f32 %v762, %v866
    %v868 = vmul.f32 %v862, %v867
    %v869 = vadd.f32 %v866, %v868
    %s870 = scalar_lea.vmem [#allocation2], 144
    %v871 = vld [vmem:[%s870] sm:$0xff]
    %v872 = vld [vmem:[%s870 + $0x8] sm:$0xff]
    %v873 = vld [vmem:[%s870 + $0x10] sm:$0xff]
    %v874 = vpack.c.bf16 %v869, %v869
    %875 = vmatprep.subr.bf16.mxu0 %v186
    %876 = vmatpush1.bf16.msra.mxu0 %v185
    %877 = vmatprep.subr.bf16.mxu0 %v189
    %878 = vmatpush1.bf16.msra.mxu0 %v188
    %879 = vmatprep.subr.bf16.mxu0 %v192
    %880 = vmatpush1.bf16.msra.mxu0 %v191
    %881 = vmatprep.subr.bf16.mxu0 %v195
    %882 = vmatpush1.bf16.msra.mxu0 %v194
    %883 = vmatprep.subr.bf16.mxu0 %v198
    %884 = vmatpush1.bf16.msra.mxu0 %v197
    %885 = vmatprep.subr.bf16.mxu0 %v201
    %886 = vmatpush1.bf16.msra.mxu0 %v200
    %887 = vmatprep.subr.bf16.mxu0 %v204
    %888 = vmatpush1.bf16.msra.mxu0 %v203
    %889 = vmatprep.subr.bf16.mxu0 %v207
    %890 = vmatpush1.bf16.msra.mxu0 %v206
    %891 = vmatprep.subr.bf16.mxu0 0
    %892 = vmatpush1.bf16.msra.mxu0 0
    %893 = vmatprep.subr.bf16.mxu0 0
    %894 = vmatpush1.bf16.msra.mxu0 0
    %895 = vmatprep.subr.bf16.mxu0 0
    %896 = vmatpush1.bf16.msra.mxu0 0
    %897 = vmatprep.subr.bf16.mxu0 0
    %898 = vmatpush1.bf16.msra.mxu0 0
    %899 = vmatprep.subr.bf16.mxu0 0
    %900 = vmatpush1.bf16.msra.mxu0 0
    %901 = vmatprep.subr.bf16.mxu0 0
    %902 = vmatpush1.bf16.msra.mxu0 0
    %903 = vmatprep.subr.bf16.mxu0 0
    %904 = vmatpush1.bf16.msra.mxu0 0
    %905 = vmatprep.subr.bf16.mxu0 0
    %906 = vmatpush1.bf16.msra.mxu0 0
    %907 = vmatprep.mubr.bf16.mxu0 0
    %908 = vmatmul.mubr.bf16.gmra.mrb[0].mxu0 %v874
    %v909 = vpop.f32.mrb[0].mxu0
    %v910 = vadd.f32 0.0, %v909
    %v911 = vpop.f32.mrb[0].mxu0
    %v912 = vadd.f32 0.0, %v911
    %v913 = vpop.f32.mrb[0].mxu0
    %v914 = vpop.f32.mrb[0].mxu0
    %915 = vdwg.mxu0
    %916 = vmatprep.subr.bf16.mxu0 0
    %917 = vmatpush1.bf16.msra.mxu0 %v187
    %918 = vmatprep.subr.bf16.mxu0 0
    %919 = vmatpush1.bf16.msra.mxu0 %v190
    %920 = vmatprep.subr.bf16.mxu0 0
    %921 = vmatpush1.bf16.msra.mxu0 %v193
    %922 = vmatprep.subr.bf16.mxu0 0
    %923 = vmatpush1.bf16.msra.mxu0 %v196
    %924 = vmatprep.subr.bf16.mxu0 0
    %925 = vmatpush1.bf16.msra.mxu0 %v199
    %926 = vmatprep.subr.bf16.mxu0 0
    %927 = vmatpush1.bf16.msra.mxu0 %v202
    %928 = vmatprep.subr.bf16.mxu0 0
    %929 = vmatpush1.bf16.msra.mxu0 %v205
    %930 = vmatprep.subr.bf16.mxu0 0
    %931 = vmatpush1.bf16.msra.mxu0 %v208
    %932 = vmatprep.subr.bf16.mxu0 0
    %933 = vmatpush1.bf16.msra.mxu0 0
    %934 = vmatprep.subr.bf16.mxu0 0
    %935 = vmatpush1.bf16.msra.mxu0 0
    %936 = vmatprep.subr.bf16.mxu0 0
    %937 = vmatpush1.bf16.msra.mxu0 0
    %938 = vmatprep.subr.bf16.mxu0 0
    %939 = vmatpush1.bf16.msra.mxu0 0
    %940 = vmatprep.subr.bf16.mxu0 0
    %941 = vmatpush1.bf16.msra.mxu0 0
    %942 = vmatprep.subr.bf16.mxu0 0
    %943 = vmatpush1.bf16.msra.mxu0 0
    %944 = vmatprep.subr.bf16.mxu0 0
    %945 = vmatpush1.bf16.msra.mxu0 0
    %946 = vmatprep.subr.bf16.mxu0 0
    %947 = vmatpush1.bf16.msra.mxu0 0
    %948 = vmatprep.mubr.bf16.mxu0 0
    %949 = vmatmul.mubr.bf16.gmra.mrb[0].mxu0 %v874
    %v950 = vpop.f32.mrb[0].mxu0
    %v951 = vadd.f32 0.0, %v950
    %v952 = vpop.f32.mrb[0].mxu0
    %v953 = vpop.f32.mrb[0].mxu0
    %v954 = vpop.f32.mrb[0].mxu0
    %955 = vdwg.mxu0
    %v956 = vadd.f32 %v871, %v910
    %v957 = vadd.f32 %v872, %v912
    %v958 = vxor.u32 %v956, 2147483648
    %v959 = vxor.u32 %v957, 2147483648
    %v960 = vmul.f32 %v958, 1.442695
    %v961 = vpow.pop %v960
    %v962 = vmul.f32 %v959, 1.442695
    %v963 = vpow.pop %v962
    %v964 = vadd.f32 %v961, 1.0
    %v965 = vadd.f32 %v963, 1.0
    %v966 = vrcp.pop %v964
    %v967 = vmul.f32 1.0, %v966
    %v968 = vrcp.pop %v965
    %v969 = vmul.f32 1.0, %v968
    %v970 = vadd.f32 %v951, %v100
    %v971 = vmul.f32 %v967, %v970
    %v972 = vadd.f32 %v873, %v971
    %v973 = vtanh.pop %v972
    %v974 = vsub.f32 %v869, %v973
    %v975 = vmul.f32 %v969, %v974
    %v976 = vadd.f32 %v973, %v975
    %s977 = scalar_lea.vmem [#allocation2], 168
    %v978 = vld [vmem:[%s977] sm:$0xff]
    %v979 = vld [vmem:[%s977 + $0x8] sm:$0xff]
    %v980 = vld [vmem:[%s977 + $0x10] sm:$0xff]
    %v981 = vpack.c.bf16 %v976, %v976
    %982 = vmatprep.subr.bf16.mxu0 %v186
    %983 = vmatpush1.bf16.msra.mxu0 %v185
    %984 = vmatprep.subr.bf16.mxu0 %v189
    %985 = vmatpush1.bf16.msra.mxu0 %v188
    %986 = vmatprep.subr.bf16.mxu0 %v192
    %987 = vmatpush1.bf16.msra.mxu0 %v191
    %988 = vmatprep.subr.bf16.mxu0 %v195
    %989 = vmatpush1.bf16.msra.mxu0 %v194
    %990 = vmatprep.subr.bf16.mxu0 %v198
    %991 = vmatpush1.bf16.msra.mxu0 %v197
    %992 = vmatprep.subr.bf16.mxu0 %v201
    %993 = vmatpush1.bf16.msra.mxu0 %v200
    %994 = vmatprep.subr.bf16.mxu0 %v204
    %995 = vmatpush1.bf16.msra.mxu0 %v203
    %996 = vmatprep.subr.bf16.mxu0 %v207
    %997 = vmatpush1.bf16.msra.mxu0 %v206
    %998 = vmatprep.subr.bf16.mxu0 0
    %999 = vmatpush1.bf16.msra.mxu0 0
    %1000 = vmatprep.subr.bf16.mxu0 0
    %1001 = vmatpush1.bf16.msra.mxu0 0
    %1002 = vmatprep.subr.bf16.mxu0 0
    %1003 = vmatpush1.bf16.msra.mxu0 0
    %1004 = vmatprep.subr.bf16.mxu0 0
    %1005 = vmatpush1.bf16.msra.mxu0 0
    %1006 = vmatprep.subr.bf16.mxu0 0
    %1007 = vmatpush1.bf16.msra.mxu0 0
    %1008 = vmatprep.subr.bf16.mxu0 0
    %1009 = vmatpush1.bf16.msra.mxu0 0
    %1010 = vmatprep.subr.bf16.mxu0 0
    %1011 = vmatpush1.bf16.msra.mxu0 0
    %1012 = vmatprep.subr.bf16.mxu0 0
    %1013 = vmatpush1.bf16.msra.mxu0 0
    %1014 = vmatprep.mubr.bf16.mxu0 0
    %1015 = vmatmul.mubr.bf16.gmra.mrb[0].mxu0 %v981
    %v1016 = vpop.f32.mrb[0].mxu0
    %v1017 = vadd.f32 0.0, %v1016
    %v1018 = vpop.f32.mrb[0].mxu0
    %v1019 = vadd.f32 0.0, %v1018
    %v1020 = vpop.f32.mrb[0].mxu0
    %v1021 = vpop.f32.mrb[0].mxu0
    %1022 = vdwg.mxu0
    %1023 = vmatprep.subr.bf16.mxu0 0
    %1024 = vmatpush1.bf16.msra.mxu0 %v187
    %1025 = vmatprep.subr.bf16.mxu0 0
    %1026 = vmatpush1.bf16.msra.mxu0 %v190
    %1027 = vmatprep.subr.bf16.mxu0 0
    %1028 = vmatpush1.bf16.msra.mxu0 %v193
    %1029 = vmatprep.subr.bf16.mxu0 0
    %1030 = vmatpush1.bf16.msra.mxu0 %v196
    %1031 = vmatprep.subr.bf16.mxu0 0
    %1032 = vmatpush1.bf16.msra.mxu0 %v199
    %1033 = vmatprep.subr.bf16.mxu0 0
    %1034 = vmatpush1.bf16.msra.mxu0 %v202
    %1035 = vmatprep.subr.bf16.mxu0 0
    %1036 = vmatpush1.bf16.msra.mxu0 %v205
    %1037 = vmatprep.subr.bf16.mxu0 0
    %1038 = vmatpush1.bf16.msra.mxu0 %v208
    %1039 = vmatprep.subr.bf16.mxu0 0
    %1040 = vmatpush1.bf16.msra.mxu0 0
    %1041 = vmatprep.subr.bf16.mxu0 0
    %1042 = vmatpush1.bf16.msra.mxu0 0
    %1043 = vmatprep.subr.bf16.mxu0 0
    %1044 = vmatpush1.bf16.msra.mxu0 0
    %1045 = vmatprep.subr.bf16.mxu0 0
    %1046 = vmatpush1.bf16.msra.mxu0 0
    %1047 = vmatprep.subr.bf16.mxu0 0
    %1048 = vmatpush1.bf16.msra.mxu0 0
    %1049 = vmatprep.subr.bf16.mxu0 0
    %1050 = vmatpush1.bf16.msra.mxu0 0
    %1051 = vmatprep.subr.bf16.mxu0 0
    %1052 = vmatpush1.bf16.msra.mxu0 0
    %1053 = vmatprep.subr.bf16.mxu0 0
    %1054 = vmatpush1.bf16.msra.mxu0 0
    %1055 = vmatprep.mubr.bf16.mxu0 0
    %1056 = vmatmul.mubr.bf16.gmra.mrb[0].mxu0 %v981
    %v1057 = vpop.f32.mrb[0].mxu0
    %v1058 = vadd.f32 0.0, %v1057
    %v1059 = vpop.f32.mrb[0].mxu0
    %v1060 = vpop.f32.mrb[0].mxu0
    %v1061 = vpop.f32.mrb[0].mxu0
    %1062 = vdwg.mxu0
    %v1063 = vadd.f32 %v978, %v1017
    %v1064 = vadd.f32 %v979, %v1019
    %v1065 = vxor.u32 %v1063, 2147483648
    %v1066 = vxor.u32 %v1064, 2147483648
    %v1067 = vmul.f32 %v1065, 1.442695
    %v1068 = vpow.pop %v1067
    %v1069 = vmul.f32 %v1066, 1.442695
    %v1070 = vpow.pop %v1069
    %v1071 = vadd.f32 %v1068, 1.0
    %v1072 = vadd.f32 %v1070, 1.0
    %v1073 = vrcp.pop %v1071
    %v1074 = vmul.f32 1.0, %v1073
    %v1075 = vrcp.pop %v1072
    %v1076 = vmul.f32 1.0, %v1075
    %v1077 = vadd.f32 %v1058, %v100
    %v1078 = vmul.f32 %v1074, %v1077
    %v1079 = vadd.f32 %v980, %v1078
    %v1080 = vtanh.pop %v1079
    %v1081 = vsub.f32 %v976, %v1080
    %v1082 = vmul.f32 %v1076, %v1081
    %v1083 = vadd.f32 %v1080, %v1082
    %v1084 = vpack.c.bf16 %v1083, %v1083
    %v1085 = vld [vmem:[#allocation7] sm:$0xf]
    %v1086 = vld [vmem:[#allocation7 + $0x4] sm:$0xf]
    %v1087 = vld [vmem:[#allocation7 + $0x8] sm:$0xf]
    %v1088 = vld [vmem:[#allocation7 + $0xc] sm:$0xf]
    %v1089 = vld [vmem:[#allocation7 + $0x10] sm:$0xf]
    %v1090 = vld [vmem:[#allocation7 + $0x14] sm:$0xf]
    %v1091 = vld [vmem:[#allocation7 + $0x18] sm:$0xf]
    %v1092 = vld [vmem:[#allocation7 + $0x1c] sm:$0xf]
    %v1093 = vld [vmem:[#allocation7 + $0x20] sm:$0xf]
    %v1094 = vld [vmem:[#allocation7 + $0x24] sm:$0xf]
    %v1095 = vld [vmem:[#allocation7 + $0x28] sm:$0xf]
    %v1096 = vld [vmem:[#allocation7 + $0x2c] sm:$0xf]
    %v1097 = vld [vmem:[#allocation7 + $0x30] sm:$0xf]
    %v1098 = vld [vmem:[#allocation7 + $0x34] sm:$0xf]
    %v1099 = vld [vmem:[#allocation7 + $0x38] sm:$0xf]
    %v1100 = vld [vmem:[#allocation7 + $0x3c] sm:$0xf]
    %v1101 = vld [vmem:[%s4] sm:$0x1]
    %v1103 = vlaneseq
    %v1104 = vshrl.u32 %v1103, 7
    %v1105 = vsub.s32 0, %v1104
    %v1106 = vrot.slane %v1101, %v1105
    %v1124 = vunpack.c.l.b16 %v1085
    %v1125 = vunpack.c.l.b16 %v1086
    %v1126 = vunpack.c.l.b16 %v1087
    %v1127 = vunpack.c.l.b16 %v1088
    %v1128 = vunpack.c.l.b16 %v1089
    %v1129 = vunpack.c.l.b16 %v1090
    %v1130 = vunpack.c.l.b16 %v1091
    %v1131 = vunpack.c.l.b16 %v1092
    %v1132 = vunpack.c.l.b16 %v1093
    %v1133 = vunpack.c.l.b16 %v1094
    %v1134 = vunpack.c.l.b16 %v1095
    %v1135 = vunpack.c.l.b16 %v1096
    %v1136 = vunpack.c.l.b16 %v1097
    %v1137 = vunpack.c.l.b16 %v1098
    %v1138 = vunpack.c.l.b16 %v1099
    %v1139 = vunpack.c.l.b16 %v1100
    %v1140 = vpack.c.b16 %v1125, %v1124
    %v1141 = vpack.c.b16 %v1127, %v1126
    %v1142 = vpack.c.b16 %v1129, %v1128
    %v1143 = vpack.c.b16 %v1131, %v1130
    %v1144 = vpack.c.b16 %v1133, %v1132
    %v1145 = vpack.c.b16 %v1135, %v1134
    %v1146 = vpack.c.b16 %v1137, %v1136
    %v1147 = vpack.c.b16 %v1139, %v1138
    %1156 = vmatprep.subr.bf16.mxu0 0
    %1157 = vmatpush1.bf16.msra.mxu0 %v1140
    %1158 = vmatprep.subr.bf16.mxu0 0
    %1159 = vmatpush1.bf16.msra.mxu0 %v1141
    %1160 = vmatprep.subr.bf16.mxu0 0
    %1161 = vmatpush1.bf16.msra.mxu0 %v1142
    %1162 = vmatprep.subr.bf16.mxu0 0
    %1163 = vmatpush1.bf16.msra.mxu0 %v1143
    %1164 = vmatprep.subr.bf16.mxu0 0
    %1165 = vmatpush1.bf16.msra.mxu0 %v1144
    %1166 = vmatprep.subr.bf16.mxu0 0
    %1167 = vmatpush1.bf16.msra.mxu0 %v1145
    %1168 = vmatprep.subr.bf16.mxu0 0
    %1169 = vmatpush1.bf16.msra.mxu0 %v1146
    %1170 = vmatprep.subr.bf16.mxu0 0
    %1171 = vmatpush1.bf16.msra.mxu0 %v1147
    %1172 = vmatprep.subr.bf16.mxu0 0
    %1173 = vmatpush1.bf16.msra.mxu0 0
    %1174 = vmatprep.subr.bf16.mxu0 0
    %1175 = vmatpush1.bf16.msra.mxu0 0
    %1176 = vmatprep.subr.bf16.mxu0 0
    %1177 = vmatpush1.bf16.msra.mxu0 0
    %1178 = vmatprep.subr.bf16.mxu0 0
    %1179 = vmatpush1.bf16.msra.mxu0 0
    %1180 = vmatprep.subr.bf16.mxu0 0
    %1181 = vmatpush1.bf16.msra.mxu0 0
    %1182 = vmatprep.subr.bf16.mxu0 0
    %1183 = vmatpush1.bf16.msra.mxu0 0
    %1184 = vmatprep.subr.bf16.mxu0 0
    %1185 = vmatpush1.bf16.msra.mxu0 0
    %1186 = vmatprep.subr.bf16.mxu0 0
    %1187 = vmatpush1.bf16.msra.mxu0 0
    %1188 = vmatprep.mubr.bf16.mxu0 0
    %1189 = vmatmul.mubr.bf16.gmra.mrb[0].mxu0 %v1084
    %v1190 = vpop.f32.mrb[0].mxu0
    %v1191 = vadd.f32 %v1106, %v1190
    %v1192 = vpop.f32.mrb[0].mxu0
    %v1193 = vpop.f32.mrb[0].mxu0
    %v1194 = vpop.f32.mrb[0].mxu0
    %1195 = vdwg.mxu0
    %1196 = vst [vmem:[#allocation8] sm:$0xff] %v1191
    // Predicated region
    $region34: #{tpu_custom_call.1} parent=1 // pred_check
      _
    $region35: #{tpu_custom_call.1} parent=1 // pred_check_branch
      %1198 = sbr.rel (0) target = $region37
    $region36: #{tpu_custom_call.1} parent=1 // pred_region
      %s1200 = ssub.s32 128, 128
      %1201 = vsyncadd [#allocation4], %s1200
      %s1203 = sshll.u32 [#allocation8], 4
      %s1204 = int_to_ptr.vmem [resolvable:$true] %s1203
      %1206 = dma.vmem_to_hbm [thread:$0]  %s1204, 128, %s5, [#allocation4]
    $region37: #{tpu_custom_call.1} parent=1 // pred_fallthru
      _
    // Predicated region
    $region38: #{tpu_custom_call.1} parent=1 // pred_check
      _
    $region39: #{tpu_custom_call.1} parent=1 // pred_check_branch
      %1208 = sbr.rel (0) target = $region41
    $region40: #{tpu_custom_call.1} parent=1 // pred_region
      %1209 = dma.done [#allocation4], 128
    $region41: #{tpu_custom_call.1} parent=1 // pred_fallthru
      _
    %1210 = vsyncpa [#allocation3], 1
    %1211 = vsyncpa [#allocation6], 1
    %1212 = vsyncpa [#allocation4], 1

</llo_original>
